<compile_context>
chip_gen: v6e
topology: v6e:2x2x1
jax: 0.10.0
libtpu: 0.0.40
codegen_flags: <defaults>
</compile_context>

<pallas_src>
import jax
import jax.numpy as jnp
from jax import lax
from jax.experimental import pallas as pl
from jax.experimental.pallas import tpu as pltpu


def _round_up(x, m):
    return ((x + m - 1) // m) * m


def _node_encoder_kernel(in_idx_ref, out_idx_ref, in_tab_ref, out_tab_ref, o_ref):
    """Vectorized gather-and-add for one block of TB nodes.

    in_idx_ref / out_idx_ref : VMEM (TB, 1) int32 index columns for this block
    in_tab_ref / out_tab_ref : VMEM (V, D) embedding tables (fully resident)
    o_ref                    : VMEM (TB, D) output tile
    """
    tb = o_ref.shape[0]
    v_in = in_tab_ref.shape[0]
    v_out = out_tab_ref.shape[0]

    in_idx = in_idx_ref[...]      # (TB, 1) int32, indices along sublanes
    out_idx = out_idx_ref[...]    # (TB, 1) int32

    # One-hot gather on the MXU: (TB, V) @ (V, D) -> (TB, D).
    onehot_in = (in_idx == lax.broadcasted_iota(jnp.int32, (tb, v_in), 1)
                 ).astype(in_tab_ref.dtype)
    onehot_out = (out_idx == lax.broadcasted_iota(jnp.int32, (tb, v_out), 1)
                  ).astype(out_tab_ref.dtype)

    acc = jnp.dot(onehot_in, in_tab_ref[...],
                  preferred_element_type=jnp.float32,
                  precision=lax.Precision.HIGHEST)
    acc = acc + jnp.dot(onehot_out, out_tab_ref[...],
                        preferred_element_type=jnp.float32,
                        precision=lax.Precision.HIGHEST)
    o_ref[...] = acc.astype(o_ref.dtype)


def node_encoder_pallas(in_degrees, out_degrees, in_table, out_table,
                        *, block_nodes=512):
    """Returns degree_encoding of shape in_degrees.shape + (embed_dim,)."""
    assert in_degrees.shape == out_degrees.shape
    assert in_table.dtype == out_table.dtype, "embedding tables must share a dtype"
    assert in_table.shape[1] == out_table.shape[1], "embed_dim mismatch"

    lead_shape = in_degrees.shape
    V_in, D = in_table.shape
    V_out = out_table.shape[0]
    dtype = in_table.dtype
    itemsize = jnp.dtype(dtype).itemsize

    # Clamp indices (free): Pallas does no runtime bounds check on VMEM refs.
    in_idx = jnp.clip(in_degrees.reshape(-1).astype(jnp.int32), 0, V_in - 1)
    out_idx = jnp.clip(out_degrees.reshape(-1).astype(jnp.int32), 0, V_out - 1)
    T = in_idx.shape[0]
    T8 = _round_up(T, 8)

    # Block of nodes per grid step: multiple of 8, capped at block_nodes.
    TB = min(_round_up(block_nodes, 8), T8)
    if TB >= T8 and T8 >= 16:
        # Keep >= 2 grid steps so v7x can shard node-blocks across its 2 TCs.
        TB = _round_up(T8 // 2, 8)
    T_pad = _round_up(T, TB)
    if T_pad != T:
        pad = T_pad - T
        # Pad with index 0 (always a valid row); padded rows are sliced off below.
        in_idx = jnp.pad(in_idx, (0, pad))
        out_idx = jnp.pad(out_idx, (0, pad))

    # (TB, 1) int32 blocks: indices land in VMEM along sublanes, ready for the
    # one-hot compare without any in-kernel relayout.
    in_idx = in_idx.reshape(T_pad, 1)
    out_idx = out_idx.reshape(T_pad, 1)

    grid = (T_pad // TB,)

    grid_spec = pltpu.PrefetchScalarGridSpec(
        num_scalar_prefetch=0,
        grid=grid,
        in_specs=[
            pl.BlockSpec((TB, 1), lambda i: (i, 0)),        # in-degree indices
            pl.BlockSpec((TB, 1), lambda i: (i, 0)),        # out-degree indices
            pl.BlockSpec((V_in, D), lambda i: (0, 0)),      # resident in-table
            pl.BlockSpec((V_out, D), lambda i: (0, 0)),     # resident out-table
        ],
        out_specs=pl.BlockSpec((TB, D), lambda i: (i, 0)),
    )

    # VMEM budget: double-buffered tables + output tiles + index tiles + one-hots.
    lane = 128
    vmem_bytes = (
        2 * (V_in + V_out) * _round_up(D, lane) * itemsize
        + 2 * TB * _round_up(D, lane) * itemsize
        + 4 * TB * lane * 4
        + TB * (_round_up(V_in, lane) + _round_up(V_out, lane)) * 4
        + (8 << 20))
    vmem_limit = int(min(max(vmem_bytes, 32 << 20), 128 << 20))

    cost = pl.CostEstimate(
        flops=2 * T_pad * (V_in + V_out) * D + T_pad * D,   # one-hot matmuls + add
        transcendentals=0,
        bytes_accessed=((V_in + V_out) * D * itemsize       # tables read once
                        + 2 * T_pad * 4                     # index vectors
                        + T_pad * D * itemsize),            # output written once
    )

    out = pl.pallas_call(
        _node_encoder_kernel,
        out_shape=jax.ShapeDtypeStruct((T_pad, D), dtype),
        grid_spec=grid_spec,
        compiler_params=pltpu.CompilerParams(
            dimension_semantics=("parallel",),              # node blocks independent
            vmem_limit_bytes=vmem_limit),
        cost_estimate=cost,
    )(in_idx, out_idx, in_table, out_table)

    if T_pad != T:
        out = out[:T]
    return out.reshape(lead_shape + (D,))


class NodeEncoder:
    """JAX/Pallas port of the PyTorch NodeEncoder (embedding + embedding + add)."""

    def __init__(self, embed_dim, num_in_degree, num_out_degree,
                 input_dropout=0.0, use_graph_token=True, key=None):
        # Deterministic synthetic parameter init (nn.Embedding default ~ N(0, 1)).
        if key is None:
            key = jax.random.PRNGKey(0)
        k_in, k_out = jax.random.split(key)
        self.in_degree_encoder = jax.random.normal(
            k_in, (num_in_degree, embed_dim), dtype=jnp.float32)
        self.out_degree_encoder = jax.random.normal(
            k_out, (num_out_degree, embed_dim), dtype=jnp.float32)
        # input_dropout is unused in the reference forward pass.

    def __call__(self, in_degrees, out_degrees, *, block_nodes=512):
        return node_encoder_pallas(
            in_degrees, out_degrees,
            self.in_degree_encoder, self.out_degree_encoder,
            block_nodes=block_nodes)


if __name__ == "__main__":
    key = jax.random.PRNGKey(0)
    k_params, k_in, k_out = jax.random.split(key, 3)

    # Small, module-consistent shapes. D=128 keeps the output lane-dense; a small
    # block_nodes exercises the multi-block grid path plus index padding.
    batch, num_nodes = 2, 20
    embed_dim, num_in_degree, num_out_degree = 128, 64, 64

    enc = NodeEncoder(embed_dim, num_in_degree, num_out_degree, key=k_params)

    in_degrees = jax.random.randint(k_in, (batch, num_nodes), 0, num_in_degree,
                                    dtype=jnp.int32)
    out_degrees = jax.random.randint(k_out, (batch, num_nodes), 0, num_out_degree,
                                     dtype=jnp.int32)

    # Pure-JAX reference (embedding lookup + add).
    ref = (jnp.take(enc.in_degree_encoder, in_degrees, axis=0)
           + jnp.take(enc.out_degree_encoder, out_degrees, axis=0))

    # Multi-block grid path (small blocks, with tail padding).
    degree_encoding = enc(in_degrees, out_degrees, block_nodes=16)
    degree_encoding = jax.block_until_ready(degree_encoding)
    assert degree_encoding.shape == (batch, num_nodes, embed_dim)
    assert jnp.allclose(degree_encoding, ref, atol=1e-5), "mismatch vs reference"

    # Default (large-block) path.
    degree_encoding2 = jax.block_until_ready(enc(in_degrees, out_degrees))
    assert jnp.allclose(degree_encoding2, ref, atol=1e-5), "mismatch vs reference"

    print("KERNEL_OK")
</pallas_src>

<mosaic_0001>
module attributes {stable_mosaic.version = 11 : i64} {
  func.func @_node_encoder_kernel(%arg0: i32, %arg1: memref<16x1xi32, #tpu.memory_space<vmem>>, %arg2: memref<16x1xi32, #tpu.memory_space<vmem>>, %arg3: memref<64x128xf32, #tpu.memory_space<vmem>>, %arg4: memref<64x128xf32, #tpu.memory_space<vmem>>, %arg5: memref<16x128xf32, #tpu.memory_space<vmem>>) attributes {dimension_semantics = [#tpu.dimension_semantics<parallel>], iteration_bounds = array<i64: 3>, scalar_prefetch = 0 : i64, scratch_operands = 0 : i64, tpu.core_type = #tpu.core_type<tc>, window_params = [{transform_indices = @transform_0, window_bounds = array<i64: 16, 1>}, {transform_indices = @transform_1, window_bounds = array<i64: 16, 1>}, {pipeline_mode = #tpu.pipeline_mode<synchronous>, transform_indices = @transform_2, window_bounds = array<i64: 64, 128>}, {pipeline_mode = #tpu.pipeline_mode<synchronous>, transform_indices = @transform_3, window_bounds = array<i64: 64, 128>}, {transform_indices = @transform_4, window_bounds = array<i64: 16, 128>}]} {
    %c0 = arith.constant 0 : index
    %c0_0 = arith.constant 0 : index
    %0 = vector.load %arg1[%c0, %c0_0] : memref<16x1xi32, #tpu.memory_space<vmem>>, vector<16x1xi32>
    %c0_1 = arith.constant 0 : index
    %c0_2 = arith.constant 0 : index
    %1 = vector.load %arg2[%c0_1, %c0_2] : memref<16x1xi32, #tpu.memory_space<vmem>>, vector<16x1xi32>
    %2 = tpu.iota {dimensions = array<i32: 1>} : vector<16x64xi32>
    %3 = vector.broadcast %0 : vector<16x1xi32> to vector<16x64xi32>
    %4 = arith.cmpi eq, %3, %2 : vector<16x64xi32>
    %5 = arith.extui %4 : vector<16x64xi1> to vector<16x64xi32>
    %6 = arith.sitofp %5 : vector<16x64xi32> to vector<16x64xf32>
    %7 = tpu.iota {dimensions = array<i32: 1>} : vector<16x64xi32>
    %8 = vector.broadcast %1 : vector<16x1xi32> to vector<16x64xi32>
    %9 = arith.cmpi eq, %8, %7 : vector<16x64xi32>
    %10 = arith.extui %9 : vector<16x64xi1> to vector<16x64xi32>
    %11 = arith.sitofp %10 : vector<16x64xi32> to vector<16x64xf32>
    %c0_3 = arith.constant 0 : index
    %c0_4 = arith.constant 0 : index
    %12 = vector.load %arg3[%c0_3, %c0_4] : memref<64x128xf32, #tpu.memory_space<vmem>>, vector<64x128xf32>
    %cst = arith.constant dense<0.000000e+00> : vector<16x128xf32>
    %13 = tpu.matmul %6, %12, %cst {dimension_numbers = #tpu.dot_dimension_numbers<[1], [0], [0], [1], [0, 0, 1, 1], [], []>, precision = #tpu.contract_precision<fp32>} : vector<16x64xf32>, vector<64x128xf32>, vector<16x128xf32> -> vector<16x128xf32>
    %c0_5 = arith.constant 0 : index
    %c0_6 = arith.constant 0 : index
    %14 = vector.load %arg4[%c0_5, %c0_6] : memref<64x128xf32, #tpu.memory_space<vmem>>, vector<64x128xf32>
    %cst_7 = arith.constant dense<0.000000e+00> : vector<16x128xf32>
    %15 = tpu.matmul %11, %14, %cst_7 {dimension_numbers = #tpu.dot_dimension_numbers<[1], [0], [0], [1], [0, 0, 1, 1], [], []>, precision = #tpu.contract_precision<fp32>} : vector<16x64xf32>, vector<64x128xf32>, vector<16x128xf32> -> vector<16x128xf32>
    %16 = arith.addf %13, %15 : vector<16x128xf32>
    %c0_8 = arith.constant 0 : index
    %c0_9 = arith.constant 0 : index
    %17 = vector.load %arg5[%c0_8, %c0_9] : memref<16x128xf32, #tpu.memory_space<vmem>>, vector<16x128xf32>
    tpu.vector_store %arg5[%c0_8, %c0_9], %16 {strides = array<i32>} : memref<16x128xf32, #tpu.memory_space<vmem>>, vector<16x128xf32>,
    return
  }
  func.func @transform_0(%arg0: i32) -> (i32, i32) {
    %c0_i32 = arith.constant 0 : i32
    %c0_i32_0 = arith.constant 0 : i32
    return %arg0, %c0_i32 : i32, i32
  }
  func.func @transform_1(%arg0: i32) -> (i32, i32) {
    %c0_i32 = arith.constant 0 : i32
    %c0_i32_0 = arith.constant 0 : i32
    return %arg0, %c0_i32 : i32, i32
  }
  func.func @transform_2(%arg0: i32) -> (i32, i32) {
    %c0_i32 = arith.constant 0 : i32
    %c0_i32_0 = arith.constant 0 : i32
    %c0_i32_1 = arith.constant 0 : i32
    return %c0_i32, %c0_i32_0 : i32, i32
  }
  func.func @transform_3(%arg0: i32) -> (i32, i32) {
    %c0_i32 = arith.constant 0 : i32
    %c0_i32_0 = arith.constant 0 : i32
    %c0_i32_1 = arith.constant 0 : i32
    return %c0_i32, %c0_i32_0 : i32, i32
  }
  func.func @transform_4(%arg0: i32) -> (i32, i32) {
    %c0_i32 = arith.constant 0 : i32
    %c0_i32_0 = arith.constant 0 : i32
    return %arg0, %c0_i32 : i32, i32
  }
}

</mosaic_0001>

<llo_original>
// kernel: tpu_custom_call.1
$region0: #{tpu_custom_call.1}
  #allocation0 [shape = 'u32[]', space=smem, size = 0x4, offset = 0x4, fixed_abs, tag = 'smem constant byte address 0x4 - core index']
  #allocation1 [shape = 'u32[144,128]{1,0:T(1,128)}', space=vmem, size = 0x12000, scoped, tag = 'internal scratch']
  %s0 = inlined_call_operand.vmem [shape: s32[48,1], index: 0, kind: input, shape index: {}]
  %s1 = inlined_call_operand.vmem [shape: s32[48,1], index: 1, kind: input, shape index: {}]
  %s2 = inlined_call_operand.vmem [shape: f32[64,128], index: 2, kind: input, shape index: {}]
  %s3 = inlined_call_operand.hbm [shape: f32[64,128], index: 3, kind: input, shape index: {}]
  %s4 = inlined_call_operand.hbm [shape: f32[48,128], index: 4, kind: output, shape index: {}]
  %s5 = sld [smem:[#allocation0]]
  $region53: #{tpu_custom_call.1} parent=0
    _
  %s7 = ssub.s32 1, %s5
  %s8 = scalar_select 0, %s7, %s5
  $region1: #{tpu_custom_call.1} parent=0
    #allocation2 [shape = 'u8[32768]{0}', space=vmem, size = 0x8000, scoped, tag = 'input window, operand 3, single buffered']
    #allocation3 [shape = 's32[2]{0}', space=sflag, size = 0x8, scoped, tag = 'scoped memory for tpu_custom_call.1']
    #allocation4 [shape = 's32[2]{0}', space=sflag, size = 0x8, scoped, tag = 'scoped memory for tpu_custom_call.1']
    #allocation5 [shape = 'u8[16384]{0}', space=vmem, size = 0x4000, scoped, tag = 'output window, operand 0']
    %9 = vsyncpa [#allocation3], 0
    %10 = vsyncpa [#allocation4], 0
    %s11 = scalar_lea.sflag [#allocation4], 1
    %12 = vsyncpa %s11, 0
    loop: start=0, step=1, limit=5
    $region2: #{tpu_custom_call.1} parent=1 // loop_pre_header
      _
    $region3: #{tpu_custom_call.1} parent=1 // loop_header
      %s14 = sphi 0, %s18
      %p15 = scmp.ge.s32.totalorder %s14, 5
      %s24 = sphi 0, %s26
      %s27 = sphi 0, %s24
      %s28 = sphi 0, %s27
      %s44 = sphi 0, %s28
      %s50 = sphi 0, %s52
      %s53 = sphi 0, %s50
      %s54 = sphi 0, %s53
      %s70 = sphi 0, %s54
      %s74 = sphi 0, %s74
      %s76 = sphi 0, %s74
      %s77 = sphi 0, %s76
      %s91 = sphi 0, %s77
      %s95 = sphi 0, %s95
      %s97 = sphi 0, %s95
      %s98 = sphi 0, %s97
      %s112 = sphi 0, %s98
      %s118 = sphi 0, %s120
      %s121 = sphi 0, %s118
      %s122 = sphi 0, %s121
      %s138 = sphi 0, %s122
    $region4: #{tpu_custom_call.1} parent=1 // loop_header_branch
      %17 = sbr.rel (%p15) target = $region8
    $region5: #{tpu_custom_call.1} parent=1 // loop_body
      %s19 = ssub.s32 %s14, 1
      %s20 = ssub.s32 %s14, 2
      %s21 = sadd.s32 %s14, 1
      %s22 = ssub.s32 %s14, %s21
      %p23 = scmp.eq.s32.totalorder %s22, 0
      %s25 = sadd.s32 %s24, 1
      %s26 = scalar_select %p23, %s24, %s25
      %p29 = pneg %p23
      %p30 = scmp.eq.s32.totalorder %s14, 2
      %p31 = por %p29, %p30
      %p32 = scmp.ne.s32.totalorder %s24, %s27
      %p33 = scmp.eq.s32.totalorder %s14, 0
      %p34 = por %p32, %p33
      %p35 = scmp.ne.s32.totalorder %s24, %s27
      %p36 = scmp.eq.s32.totalorder %s19, 2
      %p37 = por %p35, %p36
      %p38 = scmp.ne.s32.totalorder %s27, %s28
      %p39 = scmp.eq.s32.totalorder %s19, 0
      %p40 = por %p38, %p39
      %p41 = scmp.ne.s32.totalorder %s27, %s28
      %p42 = scmp.eq.s32.totalorder %s20, 2
      %p43 = por %p41, %p42
      %p45 = scmp.ne.s32.totalorder %s28, %s44
      %p46 = scmp.eq.s32.totalorder %s20, 0
      %p47 = por %p45, %p46
      %s48 = ssub.s32 %s14, %s21
      %p49 = scmp.eq.s32.totalorder %s48, 0
      %s51 = sadd.s32 %s50, 1
      %s52 = scalar_select %p49, %s50, %s51
      %p55 = pneg %p49
      %p56 = scmp.eq.s32.totalorder %s14, 2
      %p57 = por %p55, %p56
      %p58 = scmp.ne.s32.totalorder %s50, %s53
      %p59 = scmp.eq.s32.totalorder %s14, 0
      %p60 = por %p58, %p59
      %p61 = scmp.ne.s32.totalorder %s50, %s53
      %p62 = scmp.eq.s32.totalorder %s19, 2
      %p63 = por %p61, %p62
      %p64 = scmp.ne.s32.totalorder %s53, %s54
      %p65 = scmp.eq.s32.totalorder %s19, 0
      %p66 = por %p64, %p65
      %p67 = scmp.ne.s32.totalorder %s53, %s54
      %p68 = scmp.eq.s32.totalorder %s20, 2
      %p69 = por %p67, %p68
      %p71 = scmp.ne.s32.totalorder %s54, %s70
      %p72 = scmp.eq.s32.totalorder %s20, 0
      %p73 = por %p71, %p72
      %s75 = sadd.s32 %s74, 1
      %p78 = scmp.eq.s32.totalorder %s14, 2
      %p79 = scmp.ne.s32.totalorder %s74, %s76
      %p80 = scmp.eq.s32.totalorder %s14, 0
      %p81 = por %p79, %p80
      %p82 = scmp.ne.s32.totalorder %s74, %s76
      %p83 = scmp.eq.s32.totalorder %s19, 2
      %p84 = por %p82, %p83
      %p85 = scmp.ne.s32.totalorder %s76, %s77
      %p86 = scmp.eq.s32.totalorder %s19, 0
      %p87 = por %p85, %p86
      %p88 = scmp.ne.s32.totalorder %s76, %s77
      %p89 = scmp.eq.s32.totalorder %s20, 2
      %p90 = por %p88, %p89
      %p92 = scmp.ne.s32.totalorder %s77, %s91
      %p93 = scmp.eq.s32.totalorder %s20, 0
      %p94 = por %p92, %p93
      %s96 = sadd.s32 %s95, 1
      %p99 = scmp.eq.s32.totalorder %s14, 2
      %p100 = scmp.ne.s32.totalorder %s95, %s97
      %p101 = scmp.eq.s32.totalorder %s14, 0
      %p102 = por %p100, %p101
      %p103 = scmp.ne.s32.totalorder %s95, %s97
      %p104 = scmp.eq.s32.totalorder %s19, 2
      %p105 = por %p103, %p104
      %p106 = scmp.ne.s32.totalorder %s97, %s98
      %p107 = scmp.eq.s32.totalorder %s19, 0
      %p108 = por %p106, %p107
      %p109 = scmp.ne.s32.totalorder %s97, %s98
      %p110 = scmp.eq.s32.totalorder %s20, 2
      %p111 = por %p109, %p110
      %p113 = scmp.ne.s32.totalorder %s98, %s112
      %p114 = scmp.eq.s32.totalorder %s20, 0
      %p115 = por %p113, %p114
      %s116 = ssub.s32 %s14, %s21
      %p117 = scmp.eq.s32.totalorder %s116, 0
      %s119 = sadd.s32 %s118, 1
      %s120 = scalar_select %p117, %s118, %s119
      %p123 = pneg %p117
      %p124 = scmp.eq.s32.totalorder %s14, 2
      %p125 = por %p123, %p124
      %p126 = scmp.ne.s32.totalorder %s118, %s121
      %p127 = scmp.eq.s32.totalorder %s14, 0
      %p128 = por %p126, %p127
      %p129 = scmp.ne.s32.totalorder %s118, %s121
      %p130 = scmp.eq.s32.totalorder %s19, 2
      %p131 = por %p129, %p130
      %p132 = scmp.ne.s32.totalorder %s121, %s122
      %p133 = scmp.eq.s32.totalorder %s19, 0
      %p134 = por %p132, %p133
      %p135 = scmp.ne.s32.totalorder %s121, %s122
      %p136 = scmp.eq.s32.totalorder %s20, 2
      %p137 = por %p135, %p136
      %p139 = scmp.ne.s32.totalorder %s122, %s138
      %p140 = scmp.eq.s32.totalorder %s20, 0
      %p141 = por %p139, %p140
      %p142 = scmp.le.s32.totalorder 1, %s14
      %p143 = scmp.lt.s32.totalorder %s14, 4
      %p144 = pnand %p142, %p143
      %p145 = pneg %p144
      // Predicated region
      $region9: #{tpu_custom_call.1} parent=5 // pred_check
        _
      $region10: #{tpu_custom_call.1} parent=5 // pred_check_branch
        %147 = sbr.rel (%p144) target = $region12
      $region11: #{tpu_custom_call.1} parent=5 // pred_region
        %s148 = ssub.s32 %s14, 1
        // Predicated region
        $region13: #{tpu_custom_call.1} parent=11 // pred_check
          %p149 = pneg %p87
        $region14: #{tpu_custom_call.1} parent=11 // pred_check_branch
          %151 = sbr.rel (%p149) target = $region16
        $region15: #{tpu_custom_call.1} parent=11 // pred_region
          _
        $region16: #{tpu_custom_call.1} parent=11 // pred_fallthru
          _
        // Predicated region
        $region17: #{tpu_custom_call.1} parent=11 // pred_check
          %p152 = pneg %p108
        $region18: #{tpu_custom_call.1} parent=11 // pred_check_branch
          %154 = sbr.rel (%p152) target = $region20
        $region19: #{tpu_custom_call.1} parent=11 // pred_region
          %s156 = ssub.s32 1024, 1024
          %157 = vsyncadd [#allocation3], %s156
          %s158 = sshll.u32 [#allocation2], 4
          %s159 = int_to_ptr.vmem [resolvable:$true] %s158
          %164 = dma.hbm_to_vmem [thread:$0]  %s3, 1024, %s159, [#allocation3], 128, 128, 8
        $region20: #{tpu_custom_call.1} parent=11 // pred_fallthru
          _
      $region12: #{tpu_custom_call.1} parent=5 // pred_fallthru
        _
      %p165 = scmp.lt.s32.totalorder %s14, 3
      // Predicated region
      $region21: #{tpu_custom_call.1} parent=5 // pred_check
        %p166 = pneg %p165
      $region22: #{tpu_custom_call.1} parent=5 // pred_check_branch
        %168 = sbr.rel (%p166) target = $region24
      $region23: #{tpu_custom_call.1} parent=5 // pred_region
        // Predicated region
        $region25: #{tpu_custom_call.1} parent=23 // pred_check
          %p169 = pneg %p34
        $region26: #{tpu_custom_call.1} parent=23 // pred_check_branch
          %171 = sbr.rel (%p169) target = $region28
        $region27: #{tpu_custom_call.1} parent=23 // pred_region
          %s172 = smul.u32 2, %s14
          %p173 = scmp.lt.s32.totalorder %s172, 5
          %s174 = scalar_select %p173, %s172, 5
          %s175 = smul.addr %s174, 8
          %s176 = scalar_lea.vmem %s0, %s175
          %s177 = smul.u32 2, %s14
        $region28: #{tpu_custom_call.1} parent=23 // pred_fallthru
          _
        // Predicated region
        $region29: #{tpu_custom_call.1} parent=23 // pred_check
          %p178 = pneg %p60
        $region30: #{tpu_custom_call.1} parent=23 // pred_check_branch
          %180 = sbr.rel (%p178) target = $region32
        $region31: #{tpu_custom_call.1} parent=23 // pred_region
          %s181 = smul.u32 2, %s14
          %p182 = scmp.lt.s32.totalorder %s181, 5
          %s183 = scalar_select %p182, %s181, 5
          %s184 = smul.addr %s183, 8
          %s185 = scalar_lea.vmem %s1, %s184
          %s186 = smul.u32 2, %s14
        $region32: #{tpu_custom_call.1} parent=23 // pred_fallthru
          _
      $region24: #{tpu_custom_call.1} parent=5 // pred_fallthru
        _
      %p187 = scmp.le.s32.totalorder 1, %s14
      %p188 = scmp.lt.s32.totalorder %s14, 4
      %p189 = pnand %p187, %p188
      %p190 = pneg %p189
      // Predicated region
      $region33: #{tpu_custom_call.1} parent=5 // pred_check
        _
      $region34: #{tpu_custom_call.1} parent=5 // pred_check_branch
        %192 = sbr.rel (%p189) target = $region36
      $region35: #{tpu_custom_call.1} parent=5 // pred_region
        %s193 = ssub.s32 %s14, 1
        // Predicated region
        $region37: #{tpu_custom_call.1} parent=35 // pred_check
          %p194 = pneg %p108
        $region38: #{tpu_custom_call.1} parent=35 // pred_check_branch
          %196 = sbr.rel (%p194) target = $region40
        $region39: #{tpu_custom_call.1} parent=35 // pred_region
          %197 = dma.done [#allocation3], 1024
        $region40: #{tpu_custom_call.1} parent=35 // pred_fallthru
          _
        %s198 = smul.u32 2, %s19
        %p199 = scmp.lt.s32.totalorder %s198, 5
        %s200 = scalar_select %p199, %s198, 5
        %s201 = smul.addr %s200, 8
        %s202 = scalar_lea.vmem %s0, %s201
        %p203 = pneg %p40
        %p204 = pneg %p37
        %s205 = smul.u32 2, %s19
        %p206 = scmp.lt.s32.totalorder %s205, 5
        %s207 = scalar_select %p206, %s205, 5
        %s208 = smul.addr %s207, 8
        %s209 = scalar_lea.vmem %s1, %s208
        %p210 = pneg %p66
        %p211 = pneg %p63
        %p212 = pneg %p87
        %p213 = pneg %p84
        %p214 = pneg %p108
        %p215 = pneg %p105
        %p216 = pneg %p134
        %p217 = pneg %p131
        %s218 = sand.u32 %s121, 1
        %s219 = scalar_lea.sflag [#allocation4], %s218
        %s220 = sand.u32 %s121, 1
        %s221 = smul.addr %s220, 16
        %s222 = scalar_lea.vmem [#allocation5], %s221
        %s223 = smul.u32 2, %s19
        %p224 = scmp.lt.s32.totalorder %s223, 5
        %s225 = scalar_select %p224, %s223, 5
        %s226 = smul.addr %s225, 8
        %s227 = scalar_lea.vmem %s0, %s226
        %s228 = smul.u32 2, %s19
        %s229 = smul.u32 2, %s19
        %p230 = scmp.lt.s32.totalorder %s229, 5
        %s231 = scalar_select %p230, %s229, 5
        %s232 = smul.addr %s231, 8
        %s233 = scalar_lea.vmem %s1, %s232
        %s234 = smul.u32 2, %s19
        %s235 = smul.u32 2, %s19
        %v236 = vld [vmem:[%s227] sm:$0xff]
        %v237 = vld [vmem:[%s227 + $0x8] sm:$0xff]
        %v238 = vld [vmem:[%s233] sm:$0xff]
        %v239 = vld [vmem:[%s233 + $0x8] sm:$0xff]
        %v240 = vlaneseq
        %v241 = vand.u32 %v240, 127
        %242 = vset.pattern.permute.xlu0 0
        %243 = vperm.xlu0 %242, %v236
        %v244 = vpop.permute.xlu0 %243
        %245 = vset.pattern.permute.xlu0 0
        %246 = vperm.xlu0 %245, %v237
        %v247 = vpop.permute.xlu0 %246
        %vm248 = vcmp.eq.s32.totalorder %v244, %v241
        %vm249 = vcmp.eq.s32.totalorder %v247, %v241
        %v250 = vsel %vm248, 1, 0
        %v251 = vsel %vm249, 1, 0
        %v252 = vcvt.s32.f32 %v250
        %v253 = vcvt.s32.f32 %v251
        %254 = vset.pattern.permute.xlu0 0
        %255 = vperm.xlu0 %254, %v238
        %v256 = vpop.permute.xlu0 %255
        %257 = vset.pattern.permute.xlu0 0
        %258 = vperm.xlu0 %257, %v239
        %v259 = vpop.permute.xlu0 %258
        %vm260 = vcmp.eq.s32.totalorder %v256, %v241
        %vm261 = vcmp.eq.s32.totalorder %v259, %v241
        %v262 = vsel %vm260, 1, 0
        %v263 = vsel %vm261, 1, 0
        %v264 = vcvt.s32.f32 %v262
        %v265 = vcvt.s32.f32 %v263
        %v266 = vld [vmem:[%s2] sm:$0xff]
        %v267 = vld [vmem:[%s2 + $0x8] sm:$0xff]
        %v268 = vld [vmem:[%s2 + $0x10] sm:$0xff]
        %v269 = vld [vmem:[%s2 + $0x18] sm:$0xff]
        %v270 = vld [vmem:[%s2 + $0x20] sm:$0xff]
        %v271 = vld [vmem:[%s2 + $0x28] sm:$0xff]
        %v272 = vld [vmem:[%s2 + $0x30] sm:$0xff]
        %v273 = vld [vmem:[%s2 + $0x38] sm:$0xff]
        %v274 = vld [vmem:[#allocation2] sm:$0xff]
        %v275 = vld [vmem:[#allocation2 + $0x8] sm:$0xff]
        %v276 = vld [vmem:[#allocation2 + $0x10] sm:$0xff]
        %v277 = vld [vmem:[#allocation2 + $0x18] sm:$0xff]
        %v278 = vld [vmem:[#allocation2 + $0x20] sm:$0xff]
        %v279 = vld [vmem:[#allocation2 + $0x28] sm:$0xff]
        %v280 = vld [vmem:[#allocation2 + $0x30] sm:$0xff]
        %v281 = vld [vmem:[#allocation2 + $0x38] sm:$0xff]
        %vm282 = vcmask 523264
        %v284 = vsel %vm282, %v264, 0
        %v287 = vsel %vm282, %v265, 0
        %289 = vmatprep.subr.mxu0 0.0
        %290 = vmatpush1.msra.mxu0 0.0
        %291 = vmatprep.subr.mxu0 0.0
        %292 = vmatpush1.msra.mxu0 0.0
        %293 = vmatprep.subr.mxu0 0.0
        %294 = vmatpush1.msra.mxu0 0.0
        %295 = vmatprep.subr.mxu0 0.0
        %296 = vmatpush1.msra.mxu0 0.0
        %297 = vmatprep.subr.mxu0 0.0
        %298 = vmatpush1.msra.mxu0 0.0
        %299 = vmatprep.subr.mxu0 0.0
        %300 = vmatpush1.msra.mxu0 0.0
        %301 = vmatprep.subr.mxu0 0.0
        %302 = vmatpush1.msra.mxu0 0.0
        %303 = vmatprep.subr.mxu0 0.0
        %304 = vmatpush1.msra.mxu0 0.0
        %305 = vmatprep.subr.mxu0 0.0
        %v306 = vand.u32 %v281, 4294901760
        %307 = vmatpush1.msra.mxu0 %v306
        %308 = vmatprep.subr.mxu0 0.0
        %v309 = vand.u32 %v280, 4294901760
        %310 = vmatpush1.msra.mxu0 %v309
        %311 = vmatprep.subr.mxu0 0.0
        %v312 = vand.u32 %v279, 4294901760
        %313 = vmatpush1.msra.mxu0 %v312
        %314 = vmatprep.subr.mxu0 0.0
        %v315 = vand.u32 %v278, 4294901760
        %316 = vmatpush1.msra.mxu0 %v315
        %317 = vmatprep.subr.mxu0 0.0
        %v318 = vand.u32 %v277, 4294901760
        %319 = vmatpush1.msra.mxu0 %v318
        %320 = vmatprep.subr.mxu0 0.0
        %v321 = vand.u32 %v276, 4294901760
        %322 = vmatpush1.msra.mxu0 %v321
        %323 = vmatprep.subr.mxu0 0.0
        %v324 = vand.u32 %v275, 4294901760
        %325 = vmatpush1.msra.mxu0 %v324
        %326 = vmatprep.subr.mxu0 0.0
        %v327 = vand.u32 %v274, 4294901760
        %328 = vmatpush1.msra.mxu0 %v327
        %329 = vmatprep.subr.mxu0 0.0
        %330 = vmatpush2.msra.mxu0 0.0
        %331 = vmatprep.subr.mxu0 0.0
        %332 = vmatpush2.msra.mxu0 0.0
        %333 = vmatprep.subr.mxu0 0.0
        %334 = vmatpush2.msra.mxu0 0.0
        %335 = vmatprep.subr.mxu0 0.0
        %336 = vmatpush2.msra.mxu0 0.0
        %337 = vmatprep.subr.mxu0 0.0
        %338 = vmatpush2.msra.mxu0 0.0
        %339 = vmatprep.subr.mxu0 0.0
        %340 = vmatpush2.msra.mxu0 0.0
        %341 = vmatprep.subr.mxu0 0.0
        %342 = vmatpush2.msra.mxu0 0.0
        %343 = vmatprep.subr.mxu0 0.0
        %344 = vmatpush2.msra.mxu0 0.0
        %345 = vmatprep.subr.mxu0 0.0
        %346 = vmatpush2.msra.mxu0 0.0
        %347 = vmatprep.subr.mxu0 0.0
        %348 = vmatpush2.msra.mxu0 0.0
        %349 = vmatprep.subr.mxu0 0.0
        %350 = vmatpush2.msra.mxu0 0.0
        %351 = vmatprep.subr.mxu0 0.0
        %352 = vmatpush2.msra.mxu0 0.0
        %353 = vmatprep.subr.mxu0 0.0
        %354 = vmatpush2.msra.mxu0 0.0
        %355 = vmatprep.subr.mxu0 0.0
        %356 = vmatpush2.msra.mxu0 0.0
        %357 = vmatprep.subr.mxu0 0.0
        %358 = vmatpush2.msra.mxu0 0.0
        %359 = vmatprep.subr.mxu0 0.0
        %360 = vmatpush2.msra.mxu0 0.0
        %361 = vmatprep.mubr.f32.mxu0 0.0
        %v362 = vand.u32 %v284, 4294901760
        %v363 = vsub.f32 %v284, %v362
        %v364 = vand.u32 %v363, 4294901760
        %v365 = vsub.f32 %v363, %v364
        %v366 = vand.u32 %v365, 4294901760
        %367 = vmatmul.mubr.f32.gmra.mxu0 %v366
        %v368 = vpop.f32.mrf.mxu0
        %v369 = vadd.f32 0.0, %v368
        %v370 = vpop.f32.mrf.mxu0
        %371 = vmatprep.mubr.f32.mxu0 0.0
        %v372 = vand.u32 %v287, 4294901760
        %v373 = vsub.f32 %v287, %v372
        %v374 = vand.u32 %v373, 4294901760
        %v375 = vsub.f32 %v373, %v374
        %v376 = vand.u32 %v375, 4294901760
        %377 = vmatmul.mubr.f32.gmra.mxu0 %v376
        %v378 = vpop.f32.mrf.mxu0
        %v379 = vadd.f32 0.0, %v378
        %v380 = vpop.f32.mrf.mxu0
        %381 = vdwg.mxu0
        %382 = vmatprep.subr.mxu0 0.0
        %383 = vmatpush1.msra.mxu0 0.0
        %384 = vmatprep.subr.mxu0 0.0
        %385 = vmatpush1.msra.mxu0 0.0
        %386 = vmatprep.subr.mxu0 0.0
        %387 = vmatpush1.msra.mxu0 0.0
        %388 = vmatprep.subr.mxu0 0.0
        %389 = vmatpush1.msra.mxu0 0.0
        %390 = vmatprep.subr.mxu0 0.0
        %391 = vmatpush1.msra.mxu0 0.0
        %392 = vmatprep.subr.mxu0 0.0
        %393 = vmatpush1.msra.mxu0 0.0
        %394 = vmatprep.subr.mxu0 0.0
        %395 = vmatpush1.msra.mxu0 0.0
        %396 = vmatprep.subr.mxu0 0.0
        %397 = vmatpush1.msra.mxu0 0.0
        %398 = vmatprep.subr.mxu0 0.0
        %v399 = vand.u32 %v281, 4294901760
        %v400 = vsub.f32 %v281, %v399
        %v401 = vand.u32 %v400, 4294901760
        %v402 = vsub.f32 %v400, %v401
        %v403 = vand.u32 %v402, 4294901760
        %404 = vmatpush1.msra.mxu0 %v403
        %405 = vmatprep.subr.mxu0 0.0
        %v406 = vand.u32 %v280, 4294901760
        %v407 = vsub.f32 %v280, %v406
        %v408 = vand.u32 %v407, 4294901760
        %v409 = vsub.f32 %v407, %v408
        %v410 = vand.u32 %v409, 4294901760
        %411 = vmatpush1.msra.mxu0 %v410
        %412 = vmatprep.subr.mxu0 0.0
        %v413 = vand.u32 %v279, 4294901760
        %v414 = vsub.f32 %v279, %v413
        %v415 = vand.u32 %v414, 4294901760
        %v416 = vsub.f32 %v414, %v415
        %v417 = vand.u32 %v416, 4294901760
        %418 = vmatpush1.msra.mxu0 %v417
        %419 = vmatprep.subr.mxu0 0.0
        %v420 = vand.u32 %v278, 4294901760
        %v421 = vsub.f32 %v278, %v420
        %v422 = vand.u32 %v421, 4294901760
        %v423 = vsub.f32 %v421, %v422
        %v424 = vand.u32 %v423, 4294901760
        %425 = vmatpush1.msra.mxu0 %v424
        %426 = vmatprep.subr.mxu0 0.0
        %v427 = vand.u32 %v277, 4294901760
        %v428 = vsub.f32 %v277, %v427
        %v429 = vand.u32 %v428, 4294901760
        %v430 = vsub.f32 %v428, %v429
        %v431 = vand.u32 %v430, 4294901760
        %432 = vmatpush1.msra.mxu0 %v431
        %433 = vmatprep.subr.mxu0 0.0
        %v434 = vand.u32 %v276, 4294901760
        %v435 = vsub.f32 %v276, %v434
        %v436 = vand.u32 %v435, 4294901760
        %v437 = vsub.f32 %v435, %v436
        %v438 = vand.u32 %v437, 4294901760
        %439 = vmatpush1.msra.mxu0 %v438
        %440 = vmatprep.subr.mxu0 0.0
        %v441 = vand.u32 %v275, 4294901760
        %v442 = vsub.f32 %v275, %v441
        %v443 = vand.u32 %v442, 4294901760
        %v444 = vsub.f32 %v442, %v443
        %v445 = vand.u32 %v444, 4294901760
        %446 = vmatpush1.msra.mxu0 %v445
        %447 = vmatprep.subr.mxu0 0.0
        %v448 = vand.u32 %v274, 4294901760
        %v449 = vsub.f32 %v274, %v448
        %v450 = vand.u32 %v449, 4294901760
        %v451 = vsub.f32 %v449, %v450
        %v452 = vand.u32 %v451, 4294901760
        %453 = vmatpush1.msra.mxu0 %v452
        %454 = vmatprep.subr.mxu0 0.0
        %455 = vmatpush2.msra.mxu0 0.0
        %456 = vmatprep.subr.mxu0 0.0
        %457 = vmatpush2.msra.mxu0 0.0
        %458 = vmatprep.subr.mxu0 0.0
        %459 = vmatpush2.msra.mxu0 0.0
        %460 = vmatprep.subr.mxu0 0.0
        %461 = vmatpush2.msra.mxu0 0.0
        %462 = vmatprep.subr.mxu0 0.0
        %463 = vmatpush2.msra.mxu0 0.0
        %464 = vmatprep.subr.mxu0 0.0
        %465 = vmatpush2.msra.mxu0 0.0
        %466 = vmatprep.subr.mxu0 0.0
        %467 = vmatpush2.msra.mxu0 0.0
        %468 = vmatprep.subr.mxu0 0.0
        %469 = vmatpush2.msra.mxu0 0.0
        %470 = vmatprep.subr.mxu0 0.0
        %471 = vmatpush2.msra.mxu0 0.0
        %472 = vmatprep.subr.mxu0 0.0
        %473 = vmatpush2.msra.mxu0 0.0
        %474 = vmatprep.subr.mxu0 0.0
        %475 = vmatpush2.msra.mxu0 0.0
        %476 = vmatprep.subr.mxu0 0.0
        %477 = vmatpush2.msra.mxu0 0.0
        %478 = vmatprep.subr.mxu0 0.0
        %479 = vmatpush2.msra.mxu0 0.0
        %480 = vmatprep.subr.mxu0 0.0
        %481 = vmatpush2.msra.mxu0 0.0
        %482 = vmatprep.subr.mxu0 0.0
        %483 = vmatpush2.msra.mxu0 0.0
        %484 = vmatprep.subr.mxu0 0.0
        %485 = vmatpush2.msra.mxu0 0.0
        %486 = vmatprep.mubr.f32.mxu0 0.0
        %v487 = vand.u32 %v284, 4294901760
        %488 = vmatmul.mubr.f32.gmra.mxu0 %v487
        %v489 = vpop.f32.mrf.mxu0
        %v490 = vadd.f32 %v369, %v489
        %v491 = vpop.f32.mrf.mxu0
        %492 = vmatprep.mubr.f32.mxu0 0.0
        %v493 = vand.u32 %v287, 4294901760
        %494 = vmatmul.mubr.f32.gmra.mxu0 %v493
        %v495 = vpop.f32.mrf.mxu0
        %v496 = vadd.f32 %v379, %v495
        %v497 = vpop.f32.mrf.mxu0
        %498 = vdwg.mxu0
        %499 = vmatprep.subr.mxu0 0.0
        %500 = vmatpush1.msra.mxu0 0.0
        %501 = vmatprep.subr.mxu0 0.0
        %502 = vmatpush1.msra.mxu0 0.0
        %503 = vmatprep.subr.mxu0 0.0
        %504 = vmatpush1.msra.mxu0 0.0
        %505 = vmatprep.subr.mxu0 0.0
        %506 = vmatpush1.msra.mxu0 0.0
        %507 = vmatprep.subr.mxu0 0.0
        %508 = vmatpush1.msra.mxu0 0.0
        %509 = vmatprep.subr.mxu0 0.0
        %510 = vmatpush1.msra.mxu0 0.0
        %511 = vmatprep.subr.mxu0 0.0
        %512 = vmatpush1.msra.mxu0 0.0
        %513 = vmatprep.subr.mxu0 0.0
        %514 = vmatpush1.msra.mxu0 0.0
        %515 = vmatprep.subr.mxu0 0.0
        %v516 = vand.u32 %v281, 4294901760
        %v517 = vsub.f32 %v281, %v516
        %518 = vmatpush1.msra.mxu0 %v517
        %519 = vmatprep.subr.mxu0 0.0
        %v520 = vand.u32 %v280, 4294901760
        %v521 = vsub.f32 %v280, %v520
        %522 = vmatpush1.msra.mxu0 %v521
        %523 = vmatprep.subr.mxu0 0.0
        %v524 = vand.u32 %v279, 4294901760
        %v525 = vsub.f32 %v279, %v524
        %526 = vmatpush1.msra.mxu0 %v525
        %527 = vmatprep.subr.mxu0 0.0
        %v528 = vand.u32 %v278, 4294901760
        %v529 = vsub.f32 %v278, %v528
        %530 = vmatpush1.msra.mxu0 %v529
        %531 = vmatprep.subr.mxu0 0.0
        %v532 = vand.u32 %v277, 4294901760
        %v533 = vsub.f32 %v277, %v532
        %534 = vmatpush1.msra.mxu0 %v533
        %535 = vmatprep.subr.mxu0 0.0
        %v536 = vand.u32 %v276, 4294901760
        %v537 = vsub.f32 %v276, %v536
        %538 = vmatpush1.msra.mxu0 %v537
        %539 = vmatprep.subr.mxu0 0.0
        %v540 = vand.u32 %v275, 4294901760
        %v541 = vsub.f32 %v275, %v540
        %542 = vmatpush1.msra.mxu0 %v541
        %543 = vmatprep.subr.mxu0 0.0
        %v544 = vand.u32 %v274, 4294901760
        %v545 = vsub.f32 %v274, %v544
        %546 = vmatpush1.msra.mxu0 %v545
        %547 = vmatprep.subr.mxu0 0.0
        %548 = vmatpush2.msra.mxu0 0.0
        %549 = vmatprep.subr.mxu0 0.0
        %550 = vmatpush2.msra.mxu0 0.0
        %551 = vmatprep.subr.mxu0 0.0
        %552 = vmatpush2.msra.mxu0 0.0
        %553 = vmatprep.subr.mxu0 0.0
        %554 = vmatpush2.msra.mxu0 0.0
        %555 = vmatprep.subr.mxu0 0.0
        %556 = vmatpush2.msra.mxu0 0.0
        %557 = vmatprep.subr.mxu0 0.0
        %558 = vmatpush2.msra.mxu0 0.0
        %559 = vmatprep.subr.mxu0 0.0
        %560 = vmatpush2.msra.mxu0 0.0
        %561 = vmatprep.subr.mxu0 0.0
        %562 = vmatpush2.msra.mxu0 0.0
        %563 = vmatprep.subr.mxu0 0.0
        %564 = vmatpush2.msra.mxu0 0.0
        %565 = vmatprep.subr.mxu0 0.0
        %566 = vmatpush2.msra.mxu0 0.0
        %567 = vmatprep.subr.mxu0 0.0
        %568 = vmatpush2.msra.mxu0 0.0
        %569 = vmatprep.subr.mxu0 0.0
        %570 = vmatpush2.msra.mxu0 0.0
        %571 = vmatprep.subr.mxu0 0.0
        %572 = vmatpush2.msra.mxu0 0.0
        %573 = vmatprep.subr.mxu0 0.0
        %574 = vmatpush2.msra.mxu0 0.0
        %575 = vmatprep.subr.mxu0 0.0
        %576 = vmatpush2.msra.mxu0 0.0
        %577 = vmatprep.subr.mxu0 0.0
        %578 = vmatpush2.msra.mxu0 0.0
        %579 = vmatprep.mubr.f32.mxu0 0.0
        %v580 = vand.u32 %v284, 4294901760
        %v581 = vsub.f32 %v284, %v580
        %582 = vmatmul.mubr.f32.gmra.mxu0 %v581
        %v583 = vpop.f32.mrf.mxu0
        %v584 = vadd.f32 %v490, %v583
        %v585 = vpop.f32.mrf.mxu0
        %586 = vmatprep.mubr.f32.mxu0 0.0
        %v587 = vand.u32 %v287, 4294901760
        %v588 = vsub.f32 %v287, %v587
        %589 = vmatmul.mubr.f32.gmra.mxu0 %v588
        %v590 = vpop.f32.mrf.mxu0
        %v591 = vadd.f32 %v496, %v590
        %v592 = vpop.f32.mrf.mxu0
        %593 = vdwg.mxu0
        %594 = vmatprep.subr.mxu0 0.0
        %595 = vmatpush1.msra.mxu0 0.0
        %596 = vmatprep.subr.mxu0 0.0
        %597 = vmatpush1.msra.mxu0 0.0
        %598 = vmatprep.subr.mxu0 0.0
        %599 = vmatpush1.msra.mxu0 0.0
        %600 = vmatprep.subr.mxu0 0.0
        %601 = vmatpush1.msra.mxu0 0.0
        %602 = vmatprep.subr.mxu0 0.0
        %603 = vmatpush1.msra.mxu0 0.0
        %604 = vmatprep.subr.mxu0 0.0
        %605 = vmatpush1.msra.mxu0 0.0
        %606 = vmatprep.subr.mxu0 0.0
        %607 = vmatpush1.msra.mxu0 0.0
        %608 = vmatprep.subr.mxu0 0.0
        %609 = vmatpush1.msra.mxu0 0.0
        %610 = vmatprep.subr.mxu0 0.0
        %v611 = vand.u32 %v281, 4294901760
        %612 = vmatpush1.msra.mxu0 %v611
        %613 = vmatprep.subr.mxu0 0.0
        %v614 = vand.u32 %v280, 4294901760
        %615 = vmatpush1.msra.mxu0 %v614
        %616 = vmatprep.subr.mxu0 0.0
        %v617 = vand.u32 %v279, 4294901760
        %618 = vmatpush1.msra.mxu0 %v617
        %619 = vmatprep.subr.mxu0 0.0
        %v620 = vand.u32 %v278, 4294901760
        %621 = vmatpush1.msra.mxu0 %v620
        %622 = vmatprep.subr.mxu0 0.0
        %v623 = vand.u32 %v277, 4294901760
        %624 = vmatpush1.msra.mxu0 %v623
        %625 = vmatprep.subr.mxu0 0.0
        %v626 = vand.u32 %v276, 4294901760
        %627 = vmatpush1.msra.mxu0 %v626
        %628 = vmatprep.subr.mxu0 0.0
        %v629 = vand.u32 %v275, 4294901760
        %630 = vmatpush1.msra.mxu0 %v629
        %631 = vmatprep.subr.mxu0 0.0
        %v632 = vand.u32 %v274, 4294901760
        %633 = vmatpush1.msra.mxu0 %v632
        %634 = vmatprep.subr.mxu0 0.0
        %635 = vmatpush2.msra.mxu0 0.0
        %636 = vmatprep.subr.mxu0 0.0
        %637 = vmatpush2.msra.mxu0 0.0
        %638 = vmatprep.subr.mxu0 0.0
        %639 = vmatpush2.msra.mxu0 0.0
        %640 = vmatprep.subr.mxu0 0.0
        %641 = vmatpush2.msra.mxu0 0.0
        %642 = vmatprep.subr.mxu0 0.0
        %643 = vmatpush2.msra.mxu0 0.0
        %644 = vmatprep.subr.mxu0 0.0
        %645 = vmatpush2.msra.mxu0 0.0
        %646 = vmatprep.subr.mxu0 0.0
        %647 = vmatpush2.msra.mxu0 0.0
        %648 = vmatprep.subr.mxu0 0.0
        %649 = vmatpush2.msra.mxu0 0.0
        %650 = vmatprep.subr.mxu0 0.0
        %651 = vmatpush2.msra.mxu0 0.0
        %652 = vmatprep.subr.mxu0 0.0
        %653 = vmatpush2.msra.mxu0 0.0
        %654 = vmatprep.subr.mxu0 0.0
        %655 = vmatpush2.msra.mxu0 0.0
        %656 = vmatprep.subr.mxu0 0.0
        %657 = vmatpush2.msra.mxu0 0.0
        %658 = vmatprep.subr.mxu0 0.0
        %659 = vmatpush2.msra.mxu0 0.0
        %660 = vmatprep.subr.mxu0 0.0
        %661 = vmatpush2.msra.mxu0 0.0
        %662 = vmatprep.subr.mxu0 0.0
        %663 = vmatpush2.msra.mxu0 0.0
        %664 = vmatprep.subr.mxu0 0.0
        %665 = vmatpush2.msra.mxu0 0.0
        %666 = vmatprep.mubr.f32.mxu0 0.0
        %v667 = vand.u32 %v284, 4294901760
        %v668 = vsub.f32 %v284, %v667
        %v669 = vand.u32 %v668, 4294901760
        %670 = vmatmul.mubr.f32.gmra.mxu0 %v669
        %v671 = vpop.f32.mrf.mxu0
        %v672 = vadd.f32 %v584, %v671
        %v673 = vpop.f32.mrf.mxu0
        %674 = vmatprep.mubr.f32.mxu0 0.0
        %v675 = vand.u32 %v287, 4294901760
        %v676 = vsub.f32 %v287, %v675
        %v677 = vand.u32 %v676, 4294901760
        %678 = vmatmul.mubr.f32.gmra.mxu0 %v677
        %v679 = vpop.f32.mrf.mxu0
        %v680 = vadd.f32 %v591, %v679
        %v681 = vpop.f32.mrf.mxu0
        %682 = vdwg.mxu0
        %683 = vmatprep.subr.mxu0 0.0
        %684 = vmatpush1.msra.mxu0 0.0
        %685 = vmatprep.subr.mxu0 0.0
        %686 = vmatpush1.msra.mxu0 0.0
        %687 = vmatprep.subr.mxu0 0.0
        %688 = vmatpush1.msra.mxu0 0.0
        %689 = vmatprep.subr.mxu0 0.0
        %690 = vmatpush1.msra.mxu0 0.0
        %691 = vmatprep.subr.mxu0 0.0
        %692 = vmatpush1.msra.mxu0 0.0
        %693 = vmatprep.subr.mxu0 0.0
        %694 = vmatpush1.msra.mxu0 0.0
        %695 = vmatprep.subr.mxu0 0.0
        %696 = vmatpush1.msra.mxu0 0.0
        %697 = vmatprep.subr.mxu0 0.0
        %698 = vmatpush1.msra.mxu0 0.0
        %699 = vmatprep.subr.mxu0 0.0
        %v700 = vand.u32 %v281, 4294901760
        %v701 = vsub.f32 %v281, %v700
        %v702 = vand.u32 %v701, 4294901760
        %703 = vmatpush1.msra.mxu0 %v702
        %704 = vmatprep.subr.mxu0 0.0
        %v705 = vand.u32 %v280, 4294901760
        %v706 = vsub.f32 %v280, %v705
        %v707 = vand.u32 %v706, 4294901760
        %708 = vmatpush1.msra.mxu0 %v707
        %709 = vmatprep.subr.mxu0 0.0
        %v710 = vand.u32 %v279, 4294901760
        %v711 = vsub.f32 %v279, %v710
        %v712 = vand.u32 %v711, 4294901760
        %713 = vmatpush1.msra.mxu0 %v712
        %714 = vmatprep.subr.mxu0 0.0
        %v715 = vand.u32 %v278, 4294901760
        %v716 = vsub.f32 %v278, %v715
        %v717 = vand.u32 %v716, 4294901760
        %718 = vmatpush1.msra.mxu0 %v717
        %719 = vmatprep.subr.mxu0 0.0
        %v720 = vand.u32 %v277, 4294901760
        %v721 = vsub.f32 %v277, %v720
        %v722 = vand.u32 %v721, 4294901760
        %723 = vmatpush1.msra.mxu0 %v722
        %724 = vmatprep.subr.mxu0 0.0
        %v725 = vand.u32 %v276, 4294901760
        %v726 = vsub.f32 %v276, %v725
        %v727 = vand.u32 %v726, 4294901760
        %728 = vmatpush1.msra.mxu0 %v727
        %729 = vmatprep.subr.mxu0 0.0
        %v730 = vand.u32 %v275, 4294901760
        %v731 = vsub.f32 %v275, %v730
        %v732 = vand.u32 %v731, 4294901760
        %733 = vmatpush1.msra.mxu0 %v732
        %734 = vmatprep.subr.mxu0 0.0
        %v735 = vand.u32 %v274, 4294901760
        %v736 = vsub.f32 %v274, %v735
        %v737 = vand.u32 %v736, 4294901760
        %738 = vmatpush1.msra.mxu0 %v737
        %739 = vmatprep.subr.mxu0 0.0
        %740 = vmatpush2.msra.mxu0 0.0
        %741 = vmatprep.subr.mxu0 0.0
        %742 = vmatpush2.msra.mxu0 0.0
        %743 = vmatprep.subr.mxu0 0.0
        %744 = vmatpush2.msra.mxu0 0.0
        %745 = vmatprep.subr.mxu0 0.0
        %746 = vmatpush2.msra.mxu0 0.0
        %747 = vmatprep.subr.mxu0 0.0
        %748 = vmatpush2.msra.mxu0 0.0
        %749 = vmatprep.subr.mxu0 0.0
        %750 = vmatpush2.msra.mxu0 0.0
        %751 = vmatprep.subr.mxu0 0.0
        %752 = vmatpush2.msra.mxu0 0.0
        %753 = vmatprep.subr.mxu0 0.0
        %754 = vmatpush2.msra.mxu0 0.0
        %755 = vmatprep.subr.mxu0 0.0
        %756 = vmatpush2.msra.mxu0 0.0
        %757 = vmatprep.subr.mxu0 0.0
        %758 = vmatpush2.msra.mxu0 0.0
        %759 = vmatprep.subr.mxu0 0.0
        %760 = vmatpush2.msra.mxu0 0.0
        %761 = vmatprep.subr.mxu0 0.0
        %762 = vmatpush2.msra.mxu0 0.0
        %763 = vmatprep.subr.mxu0 0.0
        %764 = vmatpush2.msra.mxu0 0.0
        %765 = vmatprep.subr.mxu0 0.0
        %766 = vmatpush2.msra.mxu0 0.0
        %767 = vmatprep.subr.mxu0 0.0
        %768 = vmatpush2.msra.mxu0 0.0
        %769 = vmatprep.subr.mxu0 0.0
        %770 = vmatpush2.msra.mxu0 0.0
        %771 = vmatprep.mubr.f32.mxu0 0.0
        %v772 = vand.u32 %v284, 4294901760
        %773 = vmatmul.mubr.f32.gmra.mxu0 %v772
        %v774 = vpop.f32.mrf.mxu0
        %v775 = vadd.f32 %v672, %v774
        %v776 = vpop.f32.mrf.mxu0
        %777 = vmatprep.mubr.f32.mxu0 0.0
        %v778 = vand.u32 %v287, 4294901760
        %779 = vmatmul.mubr.f32.gmra.mxu0 %v778
        %v780 = vpop.f32.mrf.mxu0
        %v781 = vadd.f32 %v680, %v780
        %v782 = vpop.f32.mrf.mxu0
        %783 = vdwg.mxu0
        %784 = vmatprep.subr.mxu0 0.0
        %785 = vmatpush1.msra.mxu0 0.0
        %786 = vmatprep.subr.mxu0 0.0
        %787 = vmatpush1.msra.mxu0 0.0
        %788 = vmatprep.subr.mxu0 0.0
        %789 = vmatpush1.msra.mxu0 0.0
        %790 = vmatprep.subr.mxu0 0.0
        %791 = vmatpush1.msra.mxu0 0.0
        %792 = vmatprep.subr.mxu0 0.0
        %793 = vmatpush1.msra.mxu0 0.0
        %794 = vmatprep.subr.mxu0 0.0
        %795 = vmatpush1.msra.mxu0 0.0
        %796 = vmatprep.subr.mxu0 0.0
        %797 = vmatpush1.msra.mxu0 0.0
        %798 = vmatprep.subr.mxu0 0.0
        %799 = vmatpush1.msra.mxu0 0.0
        %800 = vmatprep.subr.mxu0 0.0
        %v801 = vand.u32 %v281, 4294901760
        %802 = vmatpush1.msra.mxu0 %v801
        %803 = vmatprep.subr.mxu0 0.0
        %v804 = vand.u32 %v280, 4294901760
        %805 = vmatpush1.msra.mxu0 %v804
        %806 = vmatprep.subr.mxu0 0.0
        %v807 = vand.u32 %v279, 4294901760
        %808 = vmatpush1.msra.mxu0 %v807
        %809 = vmatprep.subr.mxu0 0.0
        %v810 = vand.u32 %v278, 4294901760
        %811 = vmatpush1.msra.mxu0 %v810
        %812 = vmatprep.subr.mxu0 0.0
        %v813 = vand.u32 %v277, 4294901760
        %814 = vmatpush1.msra.mxu0 %v813
        %815 = vmatprep.subr.mxu0 0.0
        %v816 = vand.u32 %v276, 4294901760
        %817 = vmatpush1.msra.mxu0 %v816
        %818 = vmatprep.subr.mxu0 0.0
        %v819 = vand.u32 %v275, 4294901760
        %820 = vmatpush1.msra.mxu0 %v819
        %821 = vmatprep.subr.mxu0 0.0
        %v822 = vand.u32 %v274, 4294901760
        %823 = vmatpush1.msra.mxu0 %v822
        %824 = vmatprep.subr.mxu0 0.0
        %825 = vmatpush2.msra.mxu0 0.0
        %826 = vmatprep.subr.mxu0 0.0
        %827 = vmatpush2.msra.mxu0 0.0
        %828 = vmatprep.subr.mxu0 0.0
        %829 = vmatpush2.msra.mxu0 0.0
        %830 = vmatprep.subr.mxu0 0.0
        %831 = vmatpush2.msra.mxu0 0.0
        %832 = vmatprep.subr.mxu0 0.0
        %833 = vmatpush2.msra.mxu0 0.0
        %834 = vmatprep.subr.mxu0 0.0
        %835 = vmatpush2.msra.mxu0 0.0
        %836 = vmatprep.subr.mxu0 0.0
        %837 = vmatpush2.msra.mxu0 0.0
        %838 = vmatprep.subr.mxu0 0.0
        %839 = vmatpush2.msra.mxu0 0.0
        %840 = vmatprep.subr.mxu0 0.0
        %841 = vmatpush2.msra.mxu0 0.0
        %842 = vmatprep.subr.mxu0 0.0
        %843 = vmatpush2.msra.mxu0 0.0
        %844 = vmatprep.subr.mxu0 0.0
        %845 = vmatpush2.msra.mxu0 0.0
        %846 = vmatprep.subr.mxu0 0.0
        %847 = vmatpush2.msra.mxu0 0.0
        %848 = vmatprep.subr.mxu0 0.0
        %849 = vmatpush2.msra.mxu0 0.0
        %850 = vmatprep.subr.mxu0 0.0
        %851 = vmatpush2.msra.mxu0 0.0
        %852 = vmatprep.subr.mxu0 0.0
        %853 = vmatpush2.msra.mxu0 0.0
        %854 = vmatprep.subr.mxu0 0.0
        %855 = vmatpush2.msra.mxu0 0.0
        %856 = vmatprep.mubr.f32.mxu0 0.0
        %v857 = vand.u32 %v284, 4294901760
        %858 = vmatmul.mubr.f32.gmra.mxu0 %v857
        %v859 = vpop.f32.mrf.mxu0
        %v860 = vadd.f32 %v775, %v859
        %v861 = vpop.f32.mrf.mxu0
        %862 = vmatprep.mubr.f32.mxu0 0.0
        %v863 = vand.u32 %v287, 4294901760
        %864 = vmatmul.mubr.f32.gmra.mxu0 %v863
        %v865 = vpop.f32.mrf.mxu0
        %v866 = vadd.f32 %v781, %v865
        %v867 = vpop.f32.mrf.mxu0
        %868 = vdwg.mxu0
        %v870 = vsel %vm282, %v252, 0
        %v873 = vsel %vm282, %v253, 0
        %875 = vmatprep.subr.mxu0 0.0
        %876 = vmatpush1.msra.mxu0 0.0
        %877 = vmatprep.subr.mxu0 0.0
        %878 = vmatpush1.msra.mxu0 0.0
        %879 = vmatprep.subr.mxu0 0.0
        %880 = vmatpush1.msra.mxu0 0.0
        %881 = vmatprep.subr.mxu0 0.0
        %882 = vmatpush1.msra.mxu0 0.0
        %883 = vmatprep.subr.mxu0 0.0
        %884 = vmatpush1.msra.mxu0 0.0
        %885 = vmatprep.subr.mxu0 0.0
        %886 = vmatpush1.msra.mxu0 0.0
        %887 = vmatprep.subr.mxu0 0.0
        %888 = vmatpush1.msra.mxu0 0.0
        %889 = vmatprep.subr.mxu0 0.0
        %890 = vmatpush1.msra.mxu0 0.0
        %891 = vmatprep.subr.mxu0 0.0
        %v892 = vand.u32 %v273, 4294901760
        %893 = vmatpush1.msra.mxu0 %v892
        %894 = vmatprep.subr.mxu0 0.0
        %v895 = vand.u32 %v272, 4294901760
        %896 = vmatpush1.msra.mxu0 %v895
        %897 = vmatprep.subr.mxu0 0.0
        %v898 = vand.u32 %v271, 4294901760
        %899 = vmatpush1.msra.mxu0 %v898
        %900 = vmatprep.subr.mxu0 0.0
        %v901 = vand.u32 %v270, 4294901760
        %902 = vmatpush1.msra.mxu0 %v901
        %903 = vmatprep.subr.mxu0 0.0
        %v904 = vand.u32 %v269, 4294901760
        %905 = vmatpush1.msra.mxu0 %v904
        %906 = vmatprep.subr.mxu0 0.0
        %v907 = vand.u32 %v268, 4294901760
        %908 = vmatpush1.msra.mxu0 %v907
        %909 = vmatprep.subr.mxu0 0.0
        %v910 = vand.u32 %v267, 4294901760
        %911 = vmatpush1.msra.mxu0 %v910
        %912 = vmatprep.subr.mxu0 0.0
        %v913 = vand.u32 %v266, 4294901760
        %914 = vmatpush1.msra.mxu0 %v913
        %915 = vmatprep.subr.mxu0 0.0
        %916 = vmatpush2.msra.mxu0 0.0
        %917 = vmatprep.subr.mxu0 0.0
        %918 = vmatpush2.msra.mxu0 0.0
        %919 = vmatprep.subr.mxu0 0.0
        %920 = vmatpush2.msra.mxu0 0.0
        %921 = vmatprep.subr.mxu0 0.0
        %922 = vmatpush2.msra.mxu0 0.0
        %923 = vmatprep.subr.mxu0 0.0
        %924 = vmatpush2.msra.mxu0 0.0
        %925 = vmatprep.subr.mxu0 0.0
        %926 = vmatpush2.msra.mxu0 0.0
        %927 = vmatprep.subr.mxu0 0.0
        %928 = vmatpush2.msra.mxu0 0.0
        %929 = vmatprep.subr.mxu0 0.0
        %930 = vmatpush2.msra.mxu0 0.0
        %931 = vmatprep.subr.mxu0 0.0
        %932 = vmatpush2.msra.mxu0 0.0
        %933 = vmatprep.subr.mxu0 0.0
        %934 = vmatpush2.msra.mxu0 0.0
        %935 = vmatprep.subr.mxu0 0.0
        %936 = vmatpush2.msra.mxu0 0.0
        %937 = vmatprep.subr.mxu0 0.0
        %938 = vmatpush2.msra.mxu0 0.0
        %939 = vmatprep.subr.mxu0 0.0
        %940 = vmatpush2.msra.mxu0 0.0
        %941 = vmatprep.subr.mxu0 0.0
        %942 = vmatpush2.msra.mxu0 0.0
        %943 = vmatprep.subr.mxu0 0.0
        %944 = vmatpush2.msra.mxu0 0.0
        %945 = vmatprep.subr.mxu0 0.0
        %946 = vmatpush2.msra.mxu0 0.0
        %947 = vmatprep.mubr.f32.mxu0 0.0
        %v948 = vand.u32 %v870, 4294901760
        %v949 = vsub.f32 %v870, %v948
        %v950 = vand.u32 %v949, 4294901760
        %v951 = vsub.f32 %v949, %v950
        %v952 = vand.u32 %v951, 4294901760
        %953 = vmatmul.mubr.f32.gmra.mxu0 %v952
        %v954 = vpop.f32.mrf.mxu0
        %v955 = vadd.f32 %v860, %v954
        %v956 = vpop.f32.mrf.mxu0
        %957 = vmatprep.mubr.f32.mxu0 0.0
        %v958 = vand.u32 %v873, 4294901760
        %v959 = vsub.f32 %v873, %v958
        %v960 = vand.u32 %v959, 4294901760
        %v961 = vsub.f32 %v959, %v960
        %v962 = vand.u32 %v961, 4294901760
        %963 = vmatmul.mubr.f32.gmra.mxu0 %v962
        %v964 = vpop.f32.mrf.mxu0
        %v965 = vadd.f32 %v866, %v964
        %v966 = vpop.f32.mrf.mxu0
        %967 = vdwg.mxu0
        %968 = vmatprep.subr.mxu0 0.0
        %969 = vmatpush1.msra.mxu0 0.0
        %970 = vmatprep.subr.mxu0 0.0
        %971 = vmatpush1.msra.mxu0 0.0
        %972 = vmatprep.subr.mxu0 0.0
        %973 = vmatpush1.msra.mxu0 0.0
        %974 = vmatprep.subr.mxu0 0.0
        %975 = vmatpush1.msra.mxu0 0.0
        %976 = vmatprep.subr.mxu0 0.0
        %977 = vmatpush1.msra.mxu0 0.0
        %978 = vmatprep.subr.mxu0 0.0
        %979 = vmatpush1.msra.mxu0 0.0
        %980 = vmatprep.subr.mxu0 0.0
        %981 = vmatpush1.msra.mxu0 0.0
        %982 = vmatprep.subr.mxu0 0.0
        %983 = vmatpush1.msra.mxu0 0.0
        %984 = vmatprep.subr.mxu0 0.0
        %v985 = vand.u32 %v273, 4294901760
        %v986 = vsub.f32 %v273, %v985
        %v987 = vand.u32 %v986, 4294901760
        %v988 = vsub.f32 %v986, %v987
        %v989 = vand.u32 %v988, 4294901760
        %990 = vmatpush1.msra.mxu0 %v989
        %991 = vmatprep.subr.mxu0 0.0
        %v992 = vand.u32 %v272, 4294901760
        %v993 = vsub.f32 %v272, %v992
        %v994 = vand.u32 %v993, 4294901760
        %v995 = vsub.f32 %v993, %v994
        %v996 = vand.u32 %v995, 4294901760
        %997 = vmatpush1.msra.mxu0 %v996
        %998 = vmatprep.subr.mxu0 0.0
        %v999 = vand.u32 %v271, 4294901760
        %v1000 = vsub.f32 %v271, %v999
        %v1001 = vand.u32 %v1000, 4294901760
        %v1002 = vsub.f32 %v1000, %v1001
        %v1003 = vand.u32 %v1002, 4294901760
        %1004 = vmatpush1.msra.mxu0 %v1003
        %1005 = vmatprep.subr.mxu0 0.0
        %v1006 = vand.u32 %v270, 4294901760
        %v1007 = vsub.f32 %v270, %v1006
        %v1008 = vand.u32 %v1007, 4294901760
        %v1009 = vsub.f32 %v1007, %v1008
        %v1010 = vand.u32 %v1009, 4294901760
        %1011 = vmatpush1.msra.mxu0 %v1010
        %1012 = vmatprep.subr.mxu0 0.0
        %v1013 = vand.u32 %v269, 4294901760
        %v1014 = vsub.f32 %v269, %v1013
        %v1015 = vand.u32 %v1014, 4294901760
        %v1016 = vsub.f32 %v1014, %v1015
        %v1017 = vand.u32 %v1016, 4294901760
        %1018 = vmatpush1.msra.mxu0 %v1017
        %1019 = vmatprep.subr.mxu0 0.0
        %v1020 = vand.u32 %v268, 4294901760
        %v1021 = vsub.f32 %v268, %v1020
        %v1022 = vand.u32 %v1021, 4294901760
        %v1023 = vsub.f32 %v1021, %v1022
        %v1024 = vand.u32 %v1023, 4294901760
        %1025 = vmatpush1.msra.mxu0 %v1024
        %1026 = vmatprep.subr.mxu0 0.0
        %v1027 = vand.u32 %v267, 4294901760
        %v1028 = vsub.f32 %v267, %v1027
        %v1029 = vand.u32 %v1028, 4294901760
        %v1030 = vsub.f32 %v1028, %v1029
        %v1031 = vand.u32 %v1030, 4294901760
        %1032 = vmatpush1.msra.mxu0 %v1031
        %1033 = vmatprep.subr.mxu0 0.0
        %v1034 = vand.u32 %v266, 4294901760
        %v1035 = vsub.f32 %v266, %v1034
        %v1036 = vand.u32 %v1035, 4294901760
        %v1037 = vsub.f32 %v1035, %v1036
        %v1038 = vand.u32 %v1037, 4294901760
        %1039 = vmatpush1.msra.mxu0 %v1038
        %1040 = vmatprep.subr.mxu0 0.0
        %1041 = vmatpush2.msra.mxu0 0.0
        %1042 = vmatprep.subr.mxu0 0.0
        %1043 = vmatpush2.msra.mxu0 0.0
        %1044 = vmatprep.subr.mxu0 0.0
        %1045 = vmatpush2.msra.mxu0 0.0
        %1046 = vmatprep.subr.mxu0 0.0
        %1047 = vmatpush2.msra.mxu0 0.0
        %1048 = vmatprep.subr.mxu0 0.0
        %1049 = vmatpush2.msra.mxu0 0.0
        %1050 = vmatprep.subr.mxu0 0.0
        %1051 = vmatpush2.msra.mxu0 0.0
        %1052 = vmatprep.subr.mxu0 0.0
        %1053 = vmatpush2.msra.mxu0 0.0
        %1054 = vmatprep.subr.mxu0 0.0
        %1055 = vmatpush2.msra.mxu0 0.0
        %1056 = vmatprep.subr.mxu0 0.0
        %1057 = vmatpush2.msra.mxu0 0.0
        %1058 = vmatprep.subr.mxu0 0.0
        %1059 = vmatpush2.msra.mxu0 0.0
        %1060 = vmatprep.subr.mxu0 0.0
        %1061 = vmatpush2.msra.mxu0 0.0
        %1062 = vmatprep.subr.mxu0 0.0
        %1063 = vmatpush2.msra.mxu0 0.0
        %1064 = vmatprep.subr.mxu0 0.0
        %1065 = vmatpush2.msra.mxu0 0.0
        %1066 = vmatprep.subr.mxu0 0.0
        %1067 = vmatpush2.msra.mxu0 0.0
        %1068 = vmatprep.subr.mxu0 0.0
        %1069 = vmatpush2.msra.mxu0 0.0
        %1070 = vmatprep.subr.mxu0 0.0
        %1071 = vmatpush2.msra.mxu0 0.0
        %1072 = vmatprep.mubr.f32.mxu0 0.0
        %v1073 = vand.u32 %v870, 4294901760
        %1074 = vmatmul.mubr.f32.gmra.mxu0 %v1073
        %v1075 = vpop.f32.mrf.mxu0
        %v1076 = vadd.f32 %v955, %v1075
        %v1077 = vpop.f32.mrf.mxu0
        %1078 = vmatprep.mubr.f32.mxu0 0.0
        %v1079 = vand.u32 %v873, 4294901760
        %1080 = vmatmul.mubr.f32.gmra.mxu0 %v1079
        %v1081 = vpop.f32.mrf.mxu0
        %v1082 = vadd.f32 %v965, %v1081
        %v1083 = vpop.f32.mrf.mxu0
        %1084 = vdwg.mxu0
        %1085 = vmatprep.subr.mxu0 0.0
        %1086 = vmatpush1.msra.mxu0 0.0
        %1087 = vmatprep.subr.mxu0 0.0
        %1088 = vmatpush1.msra.mxu0 0.0
        %1089 = vmatprep.subr.mxu0 0.0
        %1090 = vmatpush1.msra.mxu0 0.0
        %1091 = vmatprep.subr.mxu0 0.0
        %1092 = vmatpush1.msra.mxu0 0.0
        %1093 = vmatprep.subr.mxu0 0.0
        %1094 = vmatpush1.msra.mxu0 0.0
        %1095 = vmatprep.subr.mxu0 0.0
        %1096 = vmatpush1.msra.mxu0 0.0
        %1097 = vmatprep.subr.mxu0 0.0
        %1098 = vmatpush1.msra.mxu0 0.0
        %1099 = vmatprep.subr.mxu0 0.0
        %1100 = vmatpush1.msra.mxu0 0.0
        %1101 = vmatprep.subr.mxu0 0.0
        %v1102 = vand.u32 %v273, 4294901760
        %v1103 = vsub.f32 %v273, %v1102
        %1104 = vmatpush1.msra.mxu0 %v1103
        %1105 = vmatprep.subr.mxu0 0.0
        %v1106 = vand.u32 %v272, 4294901760
        %v1107 = vsub.f32 %v272, %v1106
        %1108 = vmatpush1.msra.mxu0 %v1107
        %1109 = vmatprep.subr.mxu0 0.0
        %v1110 = vand.u32 %v271, 4294901760
        %v1111 = vsub.f32 %v271, %v1110
        %1112 = vmatpush1.msra.mxu0 %v1111
        %1113 = vmatprep.subr.mxu0 0.0
        %v1114 = vand.u32 %v270, 4294901760
        %v1115 = vsub.f32 %v270, %v1114
        %1116 = vmatpush1.msra.mxu0 %v1115
        %1117 = vmatprep.subr.mxu0 0.0
        %v1118 = vand.u32 %v269, 4294901760
        %v1119 = vsub.f32 %v269, %v1118
        %1120 = vmatpush1.msra.mxu0 %v1119
        %1121 = vmatprep.subr.mxu0 0.0
        %v1122 = vand.u32 %v268, 4294901760
        %v1123 = vsub.f32 %v268, %v1122
        %1124 = vmatpush1.msra.mxu0 %v1123
        %1125 = vmatprep.subr.mxu0 0.0
        %v1126 = vand.u32 %v267, 4294901760
        %v1127 = vsub.f32 %v267, %v1126
        %1128 = vmatpush1.msra.mxu0 %v1127
        %1129 = vmatprep.subr.mxu0 0.0
        %v1130 = vand.u32 %v266, 4294901760
        %v1131 = vsub.f32 %v266, %v1130
        %1132 = vmatpush1.msra.mxu0 %v1131
        %1133 = vmatprep.subr.mxu0 0.0
        %1134 = vmatpush2.msra.mxu0 0.0
        %1135 = vmatprep.subr.mxu0 0.0
        %1136 = vmatpush2.msra.mxu0 0.0
        %1137 = vmatprep.subr.mxu0 0.0
        %1138 = vmatpush2.msra.mxu0 0.0
        %1139 = vmatprep.subr.mxu0 0.0
        %1140 = vmatpush2.msra.mxu0 0.0
        %1141 = vmatprep.subr.mxu0 0.0
        %1142 = vmatpush2.msra.mxu0 0.0
        %1143 = vmatprep.subr.mxu0 0.0
        %1144 = vmatpush2.msra.mxu0 0.0
        %1145 = vmatprep.subr.mxu0 0.0
        %1146 = vmatpush2.msra.mxu0 0.0
        %1147 = vmatprep.subr.mxu0 0.0
        %1148 = vmatpush2.msra.mxu0 0.0
        %1149 = vmatprep.subr.mxu0 0.0
        %1150 = vmatpush2.msra.mxu0 0.0
        %1151 = vmatprep.subr.mxu0 0.0
        %1152 = vmatpush2.msra.mxu0 0.0
        %1153 = vmatprep.subr.mxu0 0.0
        %1154 = vmatpush2.msra.mxu0 0.0
        %1155 = vmatprep.subr.mxu0 0.0
        %1156 = vmatpush2.msra.mxu0 0.0
        %1157 = vmatprep.subr.mxu0 0.0
        %1158 = vmatpush2.msra.mxu0 0.0
        %1159 = vmatprep.subr.mxu0 0.0
        %1160 = vmatpush2.msra.mxu0 0.0
        %1161 = vmatprep.subr.mxu0 0.0
        %1162 = vmatpush2.msra.mxu0 0.0
        %1163 = vmatprep.subr.mxu0 0.0
        %1164 = vmatpush2.msra.mxu0 0.0
        %1165 = vmatprep.mubr.f32.mxu0 0.0
        %v1166 = vand.u32 %v870, 4294901760
        %v1167 = vsub.f32 %v870, %v1166
        %1168 = vmatmul.mubr.f32.gmra.mxu0 %v1167
        %v1169 = vpop.f32.mrf.mxu0
        %v1170 = vadd.f32 %v1076, %v1169
        %v1171 = vpop.f32.mrf.mxu0
        %1172 = vmatprep.mubr.f32.mxu0 0.0
        %v1173 = vand.u32 %v873, 4294901760
        %v1174 = vsub.f32 %v873, %v1173
        %1175 = vmatmul.mubr.f32.gmra.mxu0 %v1174
        %v1176 = vpop.f32.mrf.mxu0
        %v1177 = vadd.f32 %v1082, %v1176
        %v1178 = vpop.f32.mrf.mxu0
        %1179 = vdwg.mxu0
        %1180 = vmatprep.subr.mxu0 0.0
        %1181 = vmatpush1.msra.mxu0 0.0
        %1182 = vmatprep.subr.mxu0 0.0
        %1183 = vmatpush1.msra.mxu0 0.0
        %1184 = vmatprep.subr.mxu0 0.0
        %1185 = vmatpush1.msra.mxu0 0.0
        %1186 = vmatprep.subr.mxu0 0.0
        %1187 = vmatpush1.msra.mxu0 0.0
        %1188 = vmatprep.subr.mxu0 0.0
        %1189 = vmatpush1.msra.mxu0 0.0
        %1190 = vmatprep.subr.mxu0 0.0
        %1191 = vmatpush1.msra.mxu0 0.0
        %1192 = vmatprep.subr.mxu0 0.0
        %1193 = vmatpush1.msra.mxu0 0.0
        %1194 = vmatprep.subr.mxu0 0.0
        %1195 = vmatpush1.msra.mxu0 0.0
        %1196 = vmatprep.subr.mxu0 0.0
        %v1197 = vand.u32 %v273, 4294901760
        %1198 = vmatpush1.msra.mxu0 %v1197
        %1199 = vmatprep.subr.mxu0 0.0
        %v1200 = vand.u32 %v272, 4294901760
        %1201 = vmatpush1.msra.mxu0 %v1200
        %1202 = vmatprep.subr.mxu0 0.0
        %v1203 = vand.u32 %v271, 4294901760
        %1204 = vmatpush1.msra.mxu0 %v1203
        %1205 = vmatprep.subr.mxu0 0.0
        %v1206 = vand.u32 %v270, 4294901760
        %1207 = vmatpush1.msra.mxu0 %v1206
        %1208 = vmatprep.subr.mxu0 0.0
        %v1209 = vand.u32 %v269, 4294901760
        %1210 = vmatpush1.msra.mxu0 %v1209
        %1211 = vmatprep.subr.mxu0 0.0
        %v1212 = vand.u32 %v268, 4294901760
        %1213 = vmatpush1.msra.mxu0 %v1212
        %1214 = vmatprep.subr.mxu0 0.0
        %v1215 = vand.u32 %v267, 4294901760
        %1216 = vmatpush1.msra.mxu0 %v1215
        %1217 = vmatprep.subr.mxu0 0.0
        %v1218 = vand.u32 %v266, 4294901760
        %1219 = vmatpush1.msra.mxu0 %v1218
        %1220 = vmatprep.subr.mxu0 0.0
        %1221 = vmatpush2.msra.mxu0 0.0
        %1222 = vmatprep.subr.mxu0 0.0
        %1223 = vmatpush2.msra.mxu0 0.0
        %1224 = vmatprep.subr.mxu0 0.0
        %1225 = vmatpush2.msra.mxu0 0.0
        %1226 = vmatprep.subr.mxu0 0.0
        %1227 = vmatpush2.msra.mxu0 0.0
        %1228 = vmatprep.subr.mxu0 0.0
        %1229 = vmatpush2.msra.mxu0 0.0
        %1230 = vmatprep.subr.mxu0 0.0
        %1231 = vmatpush2.msra.mxu0 0.0
        %1232 = vmatprep.subr.mxu0 0.0
        %1233 = vmatpush2.msra.mxu0 0.0
        %1234 = vmatprep.subr.mxu0 0.0
        %1235 = vmatpush2.msra.mxu0 0.0
        %1236 = vmatprep.subr.mxu0 0.0
        %1237 = vmatpush2.msra.mxu0 0.0
        %1238 = vmatprep.subr.mxu0 0.0
        %1239 = vmatpush2.msra.mxu0 0.0
        %1240 = vmatprep.subr.mxu0 0.0
        %1241 = vmatpush2.msra.mxu0 0.0
        %1242 = vmatprep.subr.mxu0 0.0
        %1243 = vmatpush2.msra.mxu0 0.0
        %1244 = vmatprep.subr.mxu0 0.0
        %1245 = vmatpush2.msra.mxu0 0.0
        %1246 = vmatprep.subr.mxu0 0.0
        %1247 = vmatpush2.msra.mxu0 0.0
        %1248 = vmatprep.subr.mxu0 0.0
        %1249 = vmatpush2.msra.mxu0 0.0
        %1250 = vmatprep.subr.mxu0 0.0
        %1251 = vmatpush2.msra.mxu0 0.0
        %1252 = vmatprep.mubr.f32.mxu0 0.0
        %v1253 = vand.u32 %v870, 4294901760
        %v1254 = vsub.f32 %v870, %v1253
        %v1255 = vand.u32 %v1254, 4294901760
        %1256 = vmatmul.mubr.f32.gmra.mxu0 %v1255
        %v1257 = vpop.f32.mrf.mxu0
        %v1258 = vadd.f32 %v1170, %v1257
        %v1259 = vpop.f32.mrf.mxu0
        %1260 = vmatprep.mubr.f32.mxu0 0.0
        %v1261 = vand.u32 %v873, 4294901760
        %v1262 = vsub.f32 %v873, %v1261
        %v1263 = vand.u32 %v1262, 4294901760
        %1264 = vmatmul.mubr.f32.gmra.mxu0 %v1263
        %v1265 = vpop.f32.mrf.mxu0
        %v1266 = vadd.f32 %v1177, %v1265
        %v1267 = vpop.f32.mrf.mxu0
        %1268 = vdwg.mxu0
        %1269 = vmatprep.subr.mxu0 0.0
        %1270 = vmatpush1.msra.mxu0 0.0
        %1271 = vmatprep.subr.mxu0 0.0
        %1272 = vmatpush1.msra.mxu0 0.0
        %1273 = vmatprep.subr.mxu0 0.0
        %1274 = vmatpush1.msra.mxu0 0.0
        %1275 = vmatprep.subr.mxu0 0.0
        %1276 = vmatpush1.msra.mxu0 0.0
        %1277 = vmatprep.subr.mxu0 0.0
        %1278 = vmatpush1.msra.mxu0 0.0
        %1279 = vmatprep.subr.mxu0 0.0
        %1280 = vmatpush1.msra.mxu0 0.0
        %1281 = vmatprep.subr.mxu0 0.0
        %1282 = vmatpush1.msra.mxu0 0.0
        %1283 = vmatprep.subr.mxu0 0.0
        %1284 = vmatpush1.msra.mxu0 0.0
        %1285 = vmatprep.subr.mxu0 0.0
        %v1286 = vand.u32 %v273, 4294901760
        %v1287 = vsub.f32 %v273, %v1286
        %v1288 = vand.u32 %v1287, 4294901760
        %1289 = vmatpush1.msra.mxu0 %v1288
        %1290 = vmatprep.subr.mxu0 0.0
        %v1291 = vand.u32 %v272, 4294901760
        %v1292 = vsub.f32 %v272, %v1291
        %v1293 = vand.u32 %v1292, 4294901760
        %1294 = vmatpush1.msra.mxu0 %v1293
        %1295 = vmatprep.subr.mxu0 0.0
        %v1296 = vand.u32 %v271, 4294901760
        %v1297 = vsub.f32 %v271, %v1296
        %v1298 = vand.u32 %v1297, 4294901760
        %1299 = vmatpush1.msra.mxu0 %v1298
        %1300 = vmatprep.subr.mxu0 0.0
        %v1301 = vand.u32 %v270, 4294901760
        %v1302 = vsub.f32 %v270, %v1301
        %v1303 = vand.u32 %v1302, 4294901760
        %1304 = vmatpush1.msra.mxu0 %v1303
        %1305 = vmatprep.subr.mxu0 0.0
        %v1306 = vand.u32 %v269, 4294901760
        %v1307 = vsub.f32 %v269, %v1306
        %v1308 = vand.u32 %v1307, 4294901760
        %1309 = vmatpush1.msra.mxu0 %v1308
        %1310 = vmatprep.subr.mxu0 0.0
        %v1311 = vand.u32 %v268, 4294901760
        %v1312 = vsub.f32 %v268, %v1311
        %v1313 = vand.u32 %v1312, 4294901760
        %1314 = vmatpush1.msra.mxu0 %v1313
        %1315 = vmatprep.subr.mxu0 0.0
        %v1316 = vand.u32 %v267, 4294901760
        %v1317 = vsub.f32 %v267, %v1316
        %v1318 = vand.u32 %v1317, 4294901760
        %1319 = vmatpush1.msra.mxu0 %v1318
        %1320 = vmatprep.subr.mxu0 0.0
        %v1321 = vand.u32 %v266, 4294901760
        %v1322 = vsub.f32 %v266, %v1321
        %v1323 = vand.u32 %v1322, 4294901760
        %1324 = vmatpush1.msra.mxu0 %v1323
        %1325 = vmatprep.subr.mxu0 0.0
        %1326 = vmatpush2.msra.mxu0 0.0
        %1327 = vmatprep.subr.mxu0 0.0
        %1328 = vmatpush2.msra.mxu0 0.0
        %1329 = vmatprep.subr.mxu0 0.0
        %1330 = vmatpush2.msra.mxu0 0.0
        %1331 = vmatprep.subr.mxu0 0.0
        %1332 = vmatpush2.msra.mxu0 0.0
        %1333 = vmatprep.subr.mxu0 0.0
        %1334 = vmatpush2.msra.mxu0 0.0
        %1335 = vmatprep.subr.mxu0 0.0
        %1336 = vmatpush2.msra.mxu0 0.0
        %1337 = vmatprep.subr.mxu0 0.0
        %1338 = vmatpush2.msra.mxu0 0.0
        %1339 = vmatprep.subr.mxu0 0.0
        %1340 = vmatpush2.msra.mxu0 0.0
        %1341 = vmatprep.subr.mxu0 0.0
        %1342 = vmatpush2.msra.mxu0 0.0
        %1343 = vmatprep.subr.mxu0 0.0
        %1344 = vmatpush2.msra.mxu0 0.0
        %1345 = vmatprep.subr.mxu0 0.0
        %1346 = vmatpush2.msra.mxu0 0.0
        %1347 = vmatprep.subr.mxu0 0.0
        %1348 = vmatpush2.msra.mxu0 0.0
        %1349 = vmatprep.subr.mxu0 0.0
        %1350 = vmatpush2.msra.mxu0 0.0
        %1351 = vmatprep.subr.mxu0 0.0
        %1352 = vmatpush2.msra.mxu0 0.0
        %1353 = vmatprep.subr.mxu0 0.0
        %1354 = vmatpush2.msra.mxu0 0.0
        %1355 = vmatprep.subr.mxu0 0.0
        %1356 = vmatpush2.msra.mxu0 0.0
        %1357 = vmatprep.mubr.f32.mxu0 0.0
        %v1358 = vand.u32 %v870, 4294901760
        %1359 = vmatmul.mubr.f32.gmra.mxu0 %v1358
        %v1360 = vpop.f32.mrf.mxu0
        %v1361 = vadd.f32 %v1258, %v1360
        %v1362 = vpop.f32.mrf.mxu0
        %1363 = vmatprep.mubr.f32.mxu0 0.0
        %v1364 = vand.u32 %v873, 4294901760
        %1365 = vmatmul.mubr.f32.gmra.mxu0 %v1364
        %v1366 = vpop.f32.mrf.mxu0
        %v1367 = vadd.f32 %v1266, %v1366
        %v1368 = vpop.f32.mrf.mxu0
        %1369 = vdwg.mxu0
        %1370 = vmatprep.subr.mxu0 0.0
        %1371 = vmatpush1.msra.mxu0 0.0
        %1372 = vmatprep.subr.mxu0 0.0
        %1373 = vmatpush1.msra.mxu0 0.0
        %1374 = vmatprep.subr.mxu0 0.0
        %1375 = vmatpush1.msra.mxu0 0.0
        %1376 = vmatprep.subr.mxu0 0.0
        %1377 = vmatpush1.msra.mxu0 0.0
        %1378 = vmatprep.subr.mxu0 0.0
        %1379 = vmatpush1.msra.mxu0 0.0
        %1380 = vmatprep.subr.mxu0 0.0
        %1381 = vmatpush1.msra.mxu0 0.0
        %1382 = vmatprep.subr.mxu0 0.0
        %1383 = vmatpush1.msra.mxu0 0.0
        %1384 = vmatprep.subr.mxu0 0.0
        %1385 = vmatpush1.msra.mxu0 0.0
        %1386 = vmatprep.subr.mxu0 0.0
        %v1387 = vand.u32 %v273, 4294901760
        %1388 = vmatpush1.msra.mxu0 %v1387
        %1389 = vmatprep.subr.mxu0 0.0
        %v1390 = vand.u32 %v272, 4294901760
        %1391 = vmatpush1.msra.mxu0 %v1390
        %1392 = vmatprep.subr.mxu0 0.0
        %v1393 = vand.u32 %v271, 4294901760
        %1394 = vmatpush1.msra.mxu0 %v1393
        %1395 = vmatprep.subr.mxu0 0.0
        %v1396 = vand.u32 %v270, 4294901760
        %1397 = vmatpush1.msra.mxu0 %v1396
        %1398 = vmatprep.subr.mxu0 0.0
        %v1399 = vand.u32 %v269, 4294901760
        %1400 = vmatpush1.msra.mxu0 %v1399
        %1401 = vmatprep.subr.mxu0 0.0
        %v1402 = vand.u32 %v268, 4294901760
        %1403 = vmatpush1.msra.mxu0 %v1402
        %1404 = vmatprep.subr.mxu0 0.0
        %v1405 = vand.u32 %v267, 4294901760
        %1406 = vmatpush1.msra.mxu0 %v1405
        %1407 = vmatprep.subr.mxu0 0.0
        %v1408 = vand.u32 %v266, 4294901760
        %1409 = vmatpush1.msra.mxu0 %v1408
        %1410 = vmatprep.subr.mxu0 0.0
        %1411 = vmatpush2.msra.mxu0 0.0
        %1412 = vmatprep.subr.mxu0 0.0
        %1413 = vmatpush2.msra.mxu0 0.0
        %1414 = vmatprep.subr.mxu0 0.0
        %1415 = vmatpush2.msra.mxu0 0.0
        %1416 = vmatprep.subr.mxu0 0.0
        %1417 = vmatpush2.msra.mxu0 0.0
        %1418 = vmatprep.subr.mxu0 0.0
        %1419 = vmatpush2.msra.mxu0 0.0
        %1420 = vmatprep.subr.mxu0 0.0
        %1421 = vmatpush2.msra.mxu0 0.0
        %1422 = vmatprep.subr.mxu0 0.0
        %1423 = vmatpush2.msra.mxu0 0.0
        %1424 = vmatprep.subr.mxu0 0.0
        %1425 = vmatpush2.msra.mxu0 0.0
        %1426 = vmatprep.subr.mxu0 0.0
        %1427 = vmatpush2.msra.mxu0 0.0
        %1428 = vmatprep.subr.mxu0 0.0
        %1429 = vmatpush2.msra.mxu0 0.0
        %1430 = vmatprep.subr.mxu0 0.0
        %1431 = vmatpush2.msra.mxu0 0.0
        %1432 = vmatprep.subr.mxu0 0.0
        %1433 = vmatpush2.msra.mxu0 0.0
        %1434 = vmatprep.subr.mxu0 0.0
        %1435 = vmatpush2.msra.mxu0 0.0
        %1436 = vmatprep.subr.mxu0 0.0
        %1437 = vmatpush2.msra.mxu0 0.0
        %1438 = vmatprep.subr.mxu0 0.0
        %1439 = vmatpush2.msra.mxu0 0.0
        %1440 = vmatprep.subr.mxu0 0.0
        %1441 = vmatpush2.msra.mxu0 0.0
        %1442 = vmatprep.mubr.f32.mxu0 0.0
        %v1443 = vand.u32 %v870, 4294901760
        %1444 = vmatmul.mubr.f32.gmra.mxu0 %v1443
        %v1445 = vpop.f32.mrf.mxu0
        %v1446 = vadd.f32 %v1361, %v1445
        %v1447 = vpop.f32.mrf.mxu0
        %1448 = vmatprep.mubr.f32.mxu0 0.0
        %v1449 = vand.u32 %v873, 4294901760
        %1450 = vmatmul.mubr.f32.gmra.mxu0 %v1449
        %v1451 = vpop.f32.mrf.mxu0
        %v1452 = vadd.f32 %v1367, %v1451
        %v1453 = vpop.f32.mrf.mxu0
        %1454 = vdwg.mxu0
        %1455 = vst [vmem:[%s222] sm:$0xff] %v1446
        %1456 = vst [vmem:[%s222 + $0x8] sm:$0xff] %v1452
        %s1457 = sand.u32 %s121, 1
        %s1458 = scalar_lea.sflag [#allocation4], %s1457
        %s1459 = sand.u32 %s121, 1
        %s1460 = smul.addr %s1459, 16
        %s1461 = scalar_lea.vmem [#allocation5], %s1460
        // Predicated region
        $region41: #{tpu_custom_call.1} parent=35 // pred_check
          %p1462 = pneg %p131
        $region42: #{tpu_custom_call.1} parent=35 // pred_check_branch
          %1464 = sbr.rel (%p1462) target = $region44
        $region43: #{tpu_custom_call.1} parent=35 // pred_region
          %s1465 = smul.u32 2, %s19
          %s1467 = ssub.s32 256, 256
          %1468 = vsyncadd %s1458, %s1467
          %s1469 = smul.addr %s1465, 128
          %s1470 = scalar_lea.hbm %s4, %s1469
          %s1471 = sshll.u32 %s1461, 4
          %s1472 = int_to_ptr.vmem [resolvable:$true] %s1471
          %1477 = dma.vmem_to_hbm [thread:$0]  %s1472, 256, %s1470, %s1458, 128, 128, 8
        $region44: #{tpu_custom_call.1} parent=35 // pred_fallthru
          _
      $region36: #{tpu_custom_call.1} parent=5 // pred_fallthru
        _
      %p1478 = scmp.le.s32.totalorder 2, %s14
      // Predicated region
      $region45: #{tpu_custom_call.1} parent=5 // pred_check
        %p1479 = pneg %p1478
      $region46: #{tpu_custom_call.1} parent=5 // pred_check_branch
        %1481 = sbr.rel (%p1479) target = $region48
      $region47: #{tpu_custom_call.1} parent=5 // pred_region
        %s1482 = ssub.s32 %s14, 2
        // Predicated region
        $region49: #{tpu_custom_call.1} parent=47 // pred_check
          %p1483 = pneg %p137
        $region50: #{tpu_custom_call.1} parent=47 // pred_check_branch
          %1485 = sbr.rel (%p1483) target = $region52
        $region51: #{tpu_custom_call.1} parent=47 // pred_region
          %s1486 = sand.u32 %s122, 1
          %s1487 = scalar_lea.sflag [#allocation4], %s1486
          %s1488 = sand.u32 %s122, 1
          %s1489 = smul.addr %s1488, 16
          %s1490 = scalar_lea.vmem [#allocation5], %s1489
          %1491 = dma.done %s1487, 256
        $region52: #{tpu_custom_call.1} parent=47 // pred_fallthru
          _
      $region48: #{tpu_custom_call.1} parent=5 // pred_fallthru
        _
    $region6: #{tpu_custom_call.1} parent=1 // loop_footer
      %s18 = sadd.s32 1, %s14
    $region7: #{tpu_custom_call.1} parent=1 // loop_footer_branch
      %13 = sbr.rel target = $region3
    $region8: #{tpu_custom_call.1} parent=1 // loop_exit
      _
    %1492 = vsyncpa [#allocation3], 1
    %s1493 = scalar_lea.sflag [#allocation3], 1
    %1494 = vsyncpa %s1493, 1
    %1495 = vsyncpa [#allocation4], 1
    %s1496 = scalar_lea.sflag [#allocation4], 1
    %1497 = vsyncpa %s1496, 1

</llo_original>
